<compile_context>
chip_gen: v7x
topology: tpu7x:2x2x1
jax: 0.10.0
libtpu: 0.0.40
codegen_flags: <defaults>
</compile_context>

<pallas_src>
import functools

import jax
import jax.numpy as jnp
from jax import lax
from jax.experimental import pallas as pl
from jax.experimental.pallas import tpu as pltpu


# ----------------------------------------------------------------------------
# Pallas kernel: whole bidirectional LSTM + residual in one invocation.
# ----------------------------------------------------------------------------
def _bilstm_kernel(T, Bp, H,
                   x2_ref,      # (T*Bp, 2D)  row-slab s = [x(t=s) | x(t=T-1-s)]
                   resid_ref,   # (T*Bp, 2H)  row-slab s = [x(s)[:, :H] | x(T-1-s)[:, H:]]
                   w_in_ref,    # (2D, 8H)    block-structured input weights
                   b_ref,       # (1, 8H)     folded biases (b_ih + b_hh)
                   w_hh_ref,    # (2H, 8H)    block-structured recurrent weights
                   out_ref,     # (T*Bp, 2H)  recurrent + residual
                   xproj_ref):  # (T*Bp, 8H)  VMEM scratch
    H2, H6 = 2 * H, 6 * H

    # Input projection for every timestep and both directions in one matmul;
    # result parked in VMEM scratch so it is not held live in vregs.
    xproj_ref[...] = (
        jnp.dot(x2_ref[...], w_in_ref[...], preferred_element_type=jnp.float32)
        + b_ref[...]
    )

    w_hh = w_hh_ref[...]                                   # (2H, 8H), resident

    def step(s, carry):
        h, c = carry                                       # (Bp, 2H): [fwd | rev]
        r = pl.multiple_of(s * Bp, Bp)                     # aligned row-slab start

        xp = xproj_ref[pl.ds(r, Bp), :]                    # (Bp, 8H)
        # Single recurrent MXU matmul for both directions.
        gates = xp + jnp.dot(h, w_hh, preferred_element_type=jnp.float32)

        # Gate column layout: [i_f i_r f_f f_r o_f o_r g_f g_r], each H wide.
        sig = jax.nn.sigmoid(gates[:, :H6])                # one EUP issue (i,f,o both dirs)
        g_g = jnp.tanh(gates[:, H6:])                      # one EUP issue (g both dirs)
        i_g = sig[:, :H2]
        f_g = sig[:, H2:2 * H2]
        o_g = sig[:, 2 * H2:]

        c_new = f_g * c + i_g * g_g                        # (Bp, 2H)
        h_new = o_g * jnp.tanh(c_new)                      # (Bp, 2H)

        # Residual fused into the single dense per-step store.  The reverse
        # half lands at the reversed-time row-slab; the wrapper un-reverses it.
        out_ref[pl.ds(r, Bp), :] = h_new + resid_ref[pl.ds(r, Bp), :]
        return h_new, c_new

    zeros = jnp.zeros((Bp, H2), jnp.float32)
    lax.fori_loop(0, T, step, (zeros, zeros), unroll=True)


# ----------------------------------------------------------------------------
# Wrapper
# ----------------------------------------------------------------------------
def _gate_blocks(w_t, H):
    """w_t: [K, 4H] columns in PyTorch gate order [i|f|g|o]; returns (i, f, o, g)."""
    return w_t[:, 0:H], w_t[:, H:2 * H], w_t[:, 3 * H:4 * H], w_t[:, 2 * H:3 * H]


def residual_bidirectional_lstm(params, x):
    """Pallas implementation of ResidualBidirectionalLSTM.forward (eval mode).

    x: [B, T, D] with D == 2 * hidden_size.  Returns [B, T, D].
    """
    B, T, D = x.shape
    H = params["w_hh_f"].shape[1]
    assert D == 2 * H, "residual add requires input_size == 2 * hidden_size"
    H2, H8 = 2 * H, 8 * H

    # --- weight prep: transpose, per-direction gate reorder, and interleave
    # --- fwd/rev per gate -> column order [i_f i_r f_f f_r o_f o_r g_f g_r].
    fi, ff, fo, fg = _gate_blocks(params["w_ih_f"].T, H)      # each (D, H)
    ri, rf_, ro, rg = _gate_blocks(params["w_ih_r"].T, H)
    zD = jnp.zeros((D, H), jnp.float32)
    w_in = jnp.concatenate([
        jnp.concatenate([fi, zD, ff, zD, fo, zD, fg, zD], axis=1),   # rows 0:D  <- x(t)
        jnp.concatenate([zD, ri, zD, rf_, zD, ro, zD, rg], axis=1),  # rows D:2D <- x(T-1-t)
    ], axis=0)                                                        # (2D, 8H)

    hfi, hff, hfo, hfg = _gate_blocks(params["w_hh_f"].T, H)          # each (H, H)
    hri, hrf, hro, hrg = _gate_blocks(params["w_hh_r"].T, H)
    zH = jnp.zeros((H, H), jnp.float32)
    w_hh = jnp.concatenate([
        jnp.concatenate([hfi, zH, hff, zH, hfo, zH, hfg, zH], axis=1),  # rows 0:H  <- h_f
        jnp.concatenate([zH, hri, zH, hrf, zH, hro, zH, hrg], axis=1),  # rows H:2H <- h_r
    ], axis=0)                                                           # (2H, 8H)

    bfi, bff, bfo, bfg = _gate_blocks(
        (params["b_ih_f"] + params["b_hh_f"]).reshape(1, 4 * H), H)
    bri, brf, bro, brg = _gate_blocks(
        (params["b_ih_r"] + params["b_hh_r"]).reshape(1, 4 * H), H)
    b_all = jnp.concatenate([bfi, bri, bff, brf, bfo, bro, bfg, brg], axis=1)  # (1, 8H)

    # --- input prep: pad batch to a multiple of 8 sublanes, go time-major, and
    # --- append a time-reversed copy so each row-slab carries both the forward
    # --- (t) and reverse (T-1-t) inputs for its merged step.
    Bp = ((B + 7) // 8) * 8
    x_p = jnp.pad(x.astype(jnp.float32), ((0, Bp - B), (0, 0), (0, 0)))
    x_tm = jnp.transpose(x_p, (1, 0, 2))                   # (T, Bp, D)
    x_rev = x_tm[::-1]                                     # slab s = time T-1-s
    x2 = jnp.concatenate([x_tm, x_rev], axis=-1).reshape(T * Bp, 2 * D)
    resid = jnp.concatenate([x_tm[..., :H], x_rev[..., H:]],
                            axis=-1).reshape(T * Bp, H2)

    kernel = functools.partial(_bilstm_kernel, T, Bp, H)
    vmem = pl.BlockSpec(memory_space=pltpu.MemorySpace.VMEM)

    out2d = pl.pallas_call(
        kernel,
        out_shape=jax.ShapeDtypeStruct((T * Bp, H2), jnp.float32),
        in_specs=[vmem, vmem, vmem, vmem, vmem],
        out_specs=vmem,
        scratch_shapes=[pltpu.VMEM((T * Bp, H8), jnp.float32)],
    )(x2, resid, w_in, b_all, w_hh)

    # Un-reverse the backward half and restore batch-major [B, T, 2H].
    out_tm = out2d.reshape(T, Bp, H2)
    out = jnp.concatenate([out_tm[:, :, :H], out_tm[::-1, :, H:]], axis=-1)
    return jnp.transpose(out, (1, 0, 2))[:B]


# ----------------------------------------------------------------------------
# Pure-JAX reference (mirrors the PyTorch module exactly, eval mode)
# ----------------------------------------------------------------------------
def residual_bidirectional_lstm_ref(params, x):
    B, T, D = x.shape
    H = params["w_hh_f"].shape[1]

    def step(x_t, h, c, w_ih, w_hh, b_ih, b_hh):
        gates = x_t @ w_ih.T + b_ih + h @ w_hh.T + b_hh
        i_g, f_g, g_g, o_g = jnp.split(gates, 4, axis=-1)
        i_g = jax.nn.sigmoid(i_g)
        f_g = jax.nn.sigmoid(f_g)
        g_g = jnp.tanh(g_g)
        o_g = jax.nn.sigmoid(o_g)
        c_new = f_g * c + i_g * g_g
        h_new = o_g * jnp.tanh(c_new)
        return h_new, c_new

    h = jnp.zeros((B, H), jnp.float32)
    c = jnp.zeros((B, H), jnp.float32)
    fwd = []
    for t in range(T):
        h, c = step(x[:, t], h, c,
                    params["w_ih_f"], params["w_hh_f"],
                    params["b_ih_f"], params["b_hh_f"])
        fwd.append(h)

    h = jnp.zeros((B, H), jnp.float32)
    c = jnp.zeros((B, H), jnp.float32)
    bwd = [None] * T
    for t in range(T - 1, -1, -1):
        h, c = step(x[:, t], h, c,
                    params["w_ih_r"], params["w_hh_r"],
                    params["b_ih_r"], params["b_hh_r"])
        bwd[t] = h

    rec = jnp.stack(
        [jnp.concatenate([f_, b_], axis=-1) for f_, b_ in zip(fwd, bwd)], axis=1
    )  # [B, T, 2H]
    return rec + x  # dropout is identity in eval mode


# ----------------------------------------------------------------------------
# Main
# ----------------------------------------------------------------------------
if __name__ == "__main__":
    B, T = 2, 8
    hidden_size = 32
    input_size = 2 * hidden_size          # residual requires D == 2H
    H, D = hidden_size, input_size

    key = jax.random.PRNGKey(0)
    ks = jax.random.split(key, 10)
    scale = 0.1

    params = {
        "w_ih_f": scale * jax.random.normal(ks[0], (4 * H, D), jnp.float32),
        "w_hh_f": scale * jax.random.normal(ks[1], (4 * H, H), jnp.float32),
        "b_ih_f": scale * jax.random.normal(ks[2], (4 * H,), jnp.float32),
        "b_hh_f": scale * jax.random.normal(ks[3], (4 * H,), jnp.float32),
        "w_ih_r": scale * jax.random.normal(ks[4], (4 * H, D), jnp.float32),
        "w_hh_r": scale * jax.random.normal(ks[5], (4 * H, H), jnp.float32),
        "b_ih_r": scale * jax.random.normal(ks[6], (4 * H,), jnp.float32),
        "b_hh_r": scale * jax.random.normal(ks[7], (4 * H,), jnp.float32),
    }

    x = jax.random.normal(ks[8], (B, T, D), jnp.float32)

    out = residual_bidirectional_lstm(params, x)
    jax.block_until_ready(out)

    out_ref = residual_bidirectional_lstm_ref(params, x)

    assert out.shape == (B, T, 2 * H), "shape mismatch"
    assert jnp.allclose(out, out_ref, atol=1e-4, rtol=1e-4), "output mismatch"

    print("KERNEL_OK")
</pallas_src>

<mosaic_0001>
module attributes {stable_mosaic.version = 11 : i64} {
  func.func @_bilstm_kernel(%arg0: memref<64x128xf32, #tpu.memory_space<vmem>>, %arg1: memref<64x64xf32, #tpu.memory_space<vmem>>, %arg2: memref<128x256xf32, #tpu.memory_space<vmem>>, %arg3: memref<1x256xf32, #tpu.memory_space<vmem>>, %arg4: memref<64x256xf32, #tpu.memory_space<vmem>>, %arg5: memref<64x64xf32, #tpu.memory_space<vmem>>, %arg6: memref<64x256xf32, #tpu.memory_space<vmem>>) attributes {dimension_semantics = [], scalar_prefetch = 0 : i64, scratch_operands = 1 : i64, tpu.core_type = #tpu.core_type<tc>} {
    %c0 = arith.constant 0 : index
    %c0_0 = arith.constant 0 : index
    %0 = vector.load %arg0[%c0, %c0_0] : memref<64x128xf32, #tpu.memory_space<vmem>>, vector<64x128xf32>
    %c0_1 = arith.constant 0 : index
    %c0_2 = arith.constant 0 : index
    %1 = vector.load %arg2[%c0_1, %c0_2] : memref<128x256xf32, #tpu.memory_space<vmem>>, vector<128x256xf32>
    %cst = arith.constant dense<0.000000e+00> : vector<64x256xf32>
    %2 = tpu.matmul %0, %1, %cst {dimension_numbers = #tpu.dot_dimension_numbers<[1], [0], [0], [1], [0, 0, 1, 1], [], []>} : vector<64x128xf32>, vector<128x256xf32>, vector<64x256xf32> -> vector<64x256xf32>
    %c0_3 = arith.constant 0 : index
    %c0_4 = arith.constant 0 : index
    %3 = vector.load %arg3[%c0_3, %c0_4] : memref<1x256xf32, #tpu.memory_space<vmem>>, vector<1x256xf32>
    %4 = vector.broadcast %3 : vector<1x256xf32> to vector<64x256xf32>
    %5 = arith.addf %2, %4 : vector<64x256xf32>
    %c0_5 = arith.constant 0 : index
    %c0_6 = arith.constant 0 : index
    %6 = vector.load %arg6[%c0_5, %c0_6] : memref<64x256xf32, #tpu.memory_space<vmem>>, vector<64x256xf32>
    tpu.vector_store %arg6[%c0_5, %c0_6], %5 {strides = array<i32>} : memref<64x256xf32, #tpu.memory_space<vmem>>, vector<64x256xf32>,
    %c0_7 = arith.constant 0 : index
    %c0_8 = arith.constant 0 : index
    %7 = vector.load %arg4[%c0_7, %c0_8] : memref<64x256xf32, #tpu.memory_space<vmem>>, vector<64x256xf32>
    %cst_9 = arith.constant 0.000000e+00 : f32
    %8 = vector.broadcast %cst_9 : f32 to vector<8x64xf32>
    %c0_i32 = arith.constant 0 : i32
    %c8_i32 = arith.constant 8 : i32
    %9 = arith.muli %c0_i32, %c8_i32 : i32
    %10 = tpu.assume_multiple %9, 8 : i32
    %11 = arith.index_cast %10 : i32 to index
    %c0_10 = arith.constant 0 : index
    %12 = vector.load %arg6[%11, %c0_10] : memref<64x256xf32, #tpu.memory_space<vmem>>, vector<8x256xf32>
    %cst_11 = arith.constant dense<0.000000e+00> : vector<8x256xf32>
    %13 = tpu.matmul %8, %7, %cst_11 {dimension_numbers = #tpu.dot_dimension_numbers<[1], [0], [0], [1], [0, 0, 1, 1], [], []>} : vector<8x64xf32>, vector<64x256xf32>, vector<8x256xf32> -> vector<8x256xf32>
    %14 = arith.addf %12, %13 : vector<8x256xf32>
    %15 = vector.extract_strided_slice %14 {offsets = [0, 0], sizes = [8, 192], strides = [1, 1]} : vector<8x256xf32> to vector<8x192xf32>
    %16 = arith.negf %15 : vector<8x192xf32>
    %17 = math.exp %16 : vector<8x192xf32>
    %cst_12 = arith.constant 1.000000e+00 : f32
    %18 = vector.broadcast %cst_12 : f32 to vector<8x192xf32>
    %19 = arith.addf %18, %17 : vector<8x192xf32>
    %20 = arith.divf %18, %19 : vector<8x192xf32>
    %21 = vector.extract_strided_slice %14 {offsets = [0, 192], sizes = [8, 64], strides = [1, 1]} : vector<8x256xf32> to vector<8x64xf32>
    %22 = math.tanh %21 : vector<8x64xf32>
    %23 = vector.extract_strided_slice %20 {offsets = [0, 0], sizes = [8, 64], strides = [1, 1]} : vector<8x192xf32> to vector<8x64xf32>
    %24 = vector.extract_strided_slice %20 {offsets = [0, 64], sizes = [8, 64], strides = [1, 1]} : vector<8x192xf32> to vector<8x64xf32>
    %25 = vector.extract_strided_slice %20 {offsets = [0, 128], sizes = [8, 64], strides = [1, 1]} : vector<8x192xf32> to vector<8x64xf32>
    %26 = arith.mulf %24, %8 : vector<8x64xf32>
    %27 = arith.mulf %23, %22 : vector<8x64xf32>
    %28 = arith.addf %26, %27 : vector<8x64xf32>
    %29 = math.tanh %28 : vector<8x64xf32>
    %30 = arith.mulf %25, %29 : vector<8x64xf32>
    %31 = arith.index_cast %10 : i32 to index
    %c0_13 = arith.constant 0 : index
    %32 = vector.load %arg1[%31, %c0_13] : memref<64x64xf32, #tpu.memory_space<vmem>>, vector<8x64xf32>
    %33 = arith.addf %30, %32 : vector<8x64xf32>
    %34 = arith.index_cast %10 : i32 to index
    %c0_14 = arith.constant 0 : index
    %35 = vector.load %arg5[%34, %c0_14] : memref<64x64xf32, #tpu.memory_space<vmem>>, vector<8x64xf32>
    tpu.vector_store %arg5[%34, %c0_14], %33 {strides = array<i32>} : memref<64x64xf32, #tpu.memory_space<vmem>>, vector<8x64xf32>,
    %c1_i32 = arith.constant 1 : i32
    %c8_i32_15 = arith.constant 8 : i32
    %36 = arith.muli %c1_i32, %c8_i32_15 : i32
    %37 = tpu.assume_multiple %36, 8 : i32
    %38 = arith.index_cast %37 : i32 to index
    %c0_16 = arith.constant 0 : index
    %39 = vector.load %arg6[%38, %c0_16] : memref<64x256xf32, #tpu.memory_space<vmem>>, vector<8x256xf32>
    %cst_17 = arith.constant dense<0.000000e+00> : vector<8x256xf32>
    %40 = tpu.matmul %30, %7, %cst_17 {dimension_numbers = #tpu.dot_dimension_numbers<[1], [0], [0], [1], [0, 0, 1, 1], [], []>} : vector<8x64xf32>, vector<64x256xf32>, vector<8x256xf32> -> vector<8x256xf32>
    %41 = arith.addf %39, %40 : vector<8x256xf32>
    %42 = vector.extract_strided_slice %41 {offsets = [0, 0], sizes = [8, 192], strides = [1, 1]} : vector<8x256xf32> to vector<8x192xf32>
    %43 = arith.negf %42 : vector<8x192xf32>
    %44 = math.exp %43 : vector<8x192xf32>
    %cst_18 = arith.constant 1.000000e+00 : f32
    %45 = vector.broadcast %cst_18 : f32 to vector<8x192xf32>
    %46 = arith.addf %45, %44 : vector<8x192xf32>
    %47 = arith.divf %45, %46 : vector<8x192xf32>
    %48 = vector.extract_strided_slice %41 {offsets = [0, 192], sizes = [8, 64], strides = [1, 1]} : vector<8x256xf32> to vector<8x64xf32>
    %49 = math.tanh %48 : vector<8x64xf32>
    %50 = vector.extract_strided_slice %47 {offsets = [0, 0], sizes = [8, 64], strides = [1, 1]} : vector<8x192xf32> to vector<8x64xf32>
    %51 = vector.extract_strided_slice %47 {offsets = [0, 64], sizes = [8, 64], strides = [1, 1]} : vector<8x192xf32> to vector<8x64xf32>
    %52 = vector.extract_strided_slice %47 {offsets = [0, 128], sizes = [8, 64], strides = [1, 1]} : vector<8x192xf32> to vector<8x64xf32>
    %53 = arith.mulf %51, %28 : vector<8x64xf32>
    %54 = arith.mulf %50, %49 : vector<8x64xf32>
    %55 = arith.addf %53, %54 : vector<8x64xf32>
    %56 = math.tanh %55 : vector<8x64xf32>
    %57 = arith.mulf %52, %56 : vector<8x64xf32>
    %58 = arith.index_cast %37 : i32 to index
    %c0_19 = arith.constant 0 : index
    %59 = vector.load %arg1[%58, %c0_19] : memref<64x64xf32, #tpu.memory_space<vmem>>, vector<8x64xf32>
    %60 = arith.addf %57, %59 : vector<8x64xf32>
    %61 = arith.index_cast %37 : i32 to index
    %c0_20 = arith.constant 0 : index
    %62 = vector.load %arg5[%61, %c0_20] : memref<64x64xf32, #tpu.memory_space<vmem>>, vector<8x64xf32>
    tpu.vector_store %arg5[%61, %c0_20], %60 {strides = array<i32>} : memref<64x64xf32, #tpu.memory_space<vmem>>, vector<8x64xf32>,
    %c2_i32 = arith.constant 2 : i32
    %c8_i32_21 = arith.constant 8 : i32
    %63 = arith.muli %c2_i32, %c8_i32_21 : i32
    %64 = tpu.assume_multiple %63, 8 : i32
    %65 = arith.index_cast %64 : i32 to index
    %c0_22 = arith.constant 0 : index
    %66 = vector.load %arg6[%65, %c0_22] : memref<64x256xf32, #tpu.memory_space<vmem>>, vector<8x256xf32>
    %cst_23 = arith.constant dense<0.000000e+00> : vector<8x256xf32>
    %67 = tpu.matmul %57, %7, %cst_23 {dimension_numbers = #tpu.dot_dimension_numbers<[1], [0], [0], [1], [0, 0, 1, 1], [], []>} : vector<8x64xf32>, vector<64x256xf32>, vector<8x256xf32> -> vector<8x256xf32>
    %68 = arith.addf %66, %67 : vector<8x256xf32>
    %69 = vector.extract_strided_slice %68 {offsets = [0, 0], sizes = [8, 192], strides = [1, 1]} : vector<8x256xf32> to vector<8x192xf32>
    %70 = arith.negf %69 : vector<8x192xf32>
    %71 = math.exp %70 : vector<8x192xf32>
    %cst_24 = arith.constant 1.000000e+00 : f32
    %72 = vector.broadcast %cst_24 : f32 to vector<8x192xf32>
    %73 = arith.addf %72, %71 : vector<8x192xf32>
    %74 = arith.divf %72, %73 : vector<8x192xf32>
    %75 = vector.extract_strided_slice %68 {offsets = [0, 192], sizes = [8, 64], strides = [1, 1]} : vector<8x256xf32> to vector<8x64xf32>
    %76 = math.tanh %75 : vector<8x64xf32>
    %77 = vector.extract_strided_slice %74 {offsets = [0, 0], sizes = [8, 64], strides = [1, 1]} : vector<8x192xf32> to vector<8x64xf32>
    %78 = vector.extract_strided_slice %74 {offsets = [0, 64], sizes = [8, 64], strides = [1, 1]} : vector<8x192xf32> to vector<8x64xf32>
    %79 = vector.extract_strided_slice %74 {offsets = [0, 128], sizes = [8, 64], strides = [1, 1]} : vector<8x192xf32> to vector<8x64xf32>
    %80 = arith.mulf %78, %55 : vector<8x64xf32>
    %81 = arith.mulf %77, %76 : vector<8x64xf32>
    %82 = arith.addf %80, %81 : vector<8x64xf32>
    %83 = math.tanh %82 : vector<8x64xf32>
    %84 = arith.mulf %79, %83 : vector<8x64xf32>
    %85 = arith.index_cast %64 : i32 to index
    %c0_25 = arith.constant 0 : index
    %86 = vector.load %arg1[%85, %c0_25] : memref<64x64xf32, #tpu.memory_space<vmem>>, vector<8x64xf32>
    %87 = arith.addf %84, %86 : vector<8x64xf32>
    %88 = arith.index_cast %64 : i32 to index
    %c0_26 = arith.constant 0 : index
    %89 = vector.load %arg5[%88, %c0_26] : memref<64x64xf32, #tpu.memory_space<vmem>>, vector<8x64xf32>
    tpu.vector_store %arg5[%88, %c0_26], %87 {strides = array<i32>} : memref<64x64xf32, #tpu.memory_space<vmem>>, vector<8x64xf32>,
    %c3_i32 = arith.constant 3 : i32
    %c8_i32_27 = arith.constant 8 : i32
    %90 = arith.muli %c3_i32, %c8_i32_27 : i32
    %91 = tpu.assume_multiple %90, 8 : i32
    %92 = arith.index_cast %91 : i32 to index
    %c0_28 = arith.constant 0 : index
    %93 = vector.load %arg6[%92, %c0_28] : memref<64x256xf32, #tpu.memory_space<vmem>>, vector<8x256xf32>
    %cst_29 = arith.constant dense<0.000000e+00> : vector<8x256xf32>
    %94 = tpu.matmul %84, %7, %cst_29 {dimension_numbers = #tpu.dot_dimension_numbers<[1], [0], [0], [1], [0, 0, 1, 1], [], []>} : vector<8x64xf32>, vector<64x256xf32>, vector<8x256xf32> -> vector<8x256xf32>
    %95 = arith.addf %93, %94 : vector<8x256xf32>
    %96 = vector.extract_strided_slice %95 {offsets = [0, 0], sizes = [8, 192], strides = [1, 1]} : vector<8x256xf32> to vector<8x192xf32>
    %97 = arith.negf %96 : vector<8x192xf32>
    %98 = math.exp %97 : vector<8x192xf32>
    %cst_30 = arith.constant 1.000000e+00 : f32
    %99 = vector.broadcast %cst_30 : f32 to vector<8x192xf32>
    %100 = arith.addf %99, %98 : vector<8x192xf32>
    %101 = arith.divf %99, %100 : vector<8x192xf32>
    %102 = vector.extract_strided_slice %95 {offsets = [0, 192], sizes = [8, 64], strides = [1, 1]} : vector<8x256xf32> to vector<8x64xf32>
    %103 = math.tanh %102 : vector<8x64xf32>
    %104 = vector.extract_strided_slice %101 {offsets = [0, 0], sizes = [8, 64], strides = [1, 1]} : vector<8x192xf32> to vector<8x64xf32>
    %105 = vector.extract_strided_slice %101 {offsets = [0, 64], sizes = [8, 64], strides = [1, 1]} : vector<8x192xf32> to vector<8x64xf32>
    %106 = vector.extract_strided_slice %101 {offsets = [0, 128], sizes = [8, 64], strides = [1, 1]} : vector<8x192xf32> to vector<8x64xf32>
    %107 = arith.mulf %105, %82 : vector<8x64xf32>
    %108 = arith.mulf %104, %103 : vector<8x64xf32>
    %109 = arith.addf %107, %108 : vector<8x64xf32>
    %110 = math.tanh %109 : vector<8x64xf32>
    %111 = arith.mulf %106, %110 : vector<8x64xf32>
    %112 = arith.index_cast %91 : i32 to index
    %c0_31 = arith.constant 0 : index
    %113 = vector.load %arg1[%112, %c0_31] : memref<64x64xf32, #tpu.memory_space<vmem>>, vector<8x64xf32>
    %114 = arith.addf %111, %113 : vector<8x64xf32>
    %115 = arith.index_cast %91 : i32 to index
    %c0_32 = arith.constant 0 : index
    %116 = vector.load %arg5[%115, %c0_32] : memref<64x64xf32, #tpu.memory_space<vmem>>, vector<8x64xf32>
    tpu.vector_store %arg5[%115, %c0_32], %114 {strides = array<i32>} : memref<64x64xf32, #tpu.memory_space<vmem>>, vector<8x64xf32>,
    %c4_i32 = arith.constant 4 : i32
    %c8_i32_33 = arith.constant 8 : i32
    %117 = arith.muli %c4_i32, %c8_i32_33 : i32
    %118 = tpu.assume_multiple %117, 8 : i32
    %119 = arith.index_cast %118 : i32 to index
    %c0_34 = arith.constant 0 : index
    %120 = vector.load %arg6[%119, %c0_34] : memref<64x256xf32, #tpu.memory_space<vmem>>, vector<8x256xf32>
    %cst_35 = arith.constant dense<0.000000e+00> : vector<8x256xf32>
    %121 = tpu.matmul %111, %7, %cst_35 {dimension_numbers = #tpu.dot_dimension_numbers<[1], [0], [0], [1], [0, 0, 1, 1], [], []>} : vector<8x64xf32>, vector<64x256xf32>, vector<8x256xf32> -> vector<8x256xf32>
    %122 = arith.addf %120, %121 : vector<8x256xf32>
    %123 = vector.extract_strided_slice %122 {offsets = [0, 0], sizes = [8, 192], strides = [1, 1]} : vector<8x256xf32> to vector<8x192xf32>
    %124 = arith.negf %123 : vector<8x192xf32>
    %125 = math.exp %124 : vector<8x192xf32>
    %cst_36 = arith.constant 1.000000e+00 : f32
    %126 = vector.broadcast %cst_36 : f32 to vector<8x192xf32>
    %127 = arith.addf %126, %125 : vector<8x192xf32>
    %128 = arith.divf %126, %127 : vector<8x192xf32>
    %129 = vector.extract_strided_slice %122 {offsets = [0, 192], sizes = [8, 64], strides = [1, 1]} : vector<8x256xf32> to vector<8x64xf32>
    %130 = math.tanh %129 : vector<8x64xf32>
    %131 = vector.extract_strided_slice %128 {offsets = [0, 0], sizes = [8, 64], strides = [1, 1]} : vector<8x192xf32> to vector<8x64xf32>
    %132 = vector.extract_strided_slice %128 {offsets = [0, 64], sizes = [8, 64], strides = [1, 1]} : vector<8x192xf32> to vector<8x64xf32>
    %133 = vector.extract_strided_slice %128 {offsets = [0, 128], sizes = [8, 64], strides = [1, 1]} : vector<8x192xf32> to vector<8x64xf32>
    %134 = arith.mulf %132, %109 : vector<8x64xf32>
    %135 = arith.mulf %131, %130 : vector<8x64xf32>
    %136 = arith.addf %134, %135 : vector<8x64xf32>
    %137 = math.tanh %136 : vector<8x64xf32>
    %138 = arith.mulf %133, %137 : vector<8x64xf32>
    %139 = arith.index_cast %118 : i32 to index
    %c0_37 = arith.constant 0 : index
    %140 = vector.load %arg1[%139, %c0_37] : memref<64x64xf32, #tpu.memory_space<vmem>>, vector<8x64xf32>
    %141 = arith.addf %138, %140 : vector<8x64xf32>
    %142 = arith.index_cast %118 : i32 to index
    %c0_38 = arith.constant 0 : index
    %143 = vector.load %arg5[%142, %c0_38] : memref<64x64xf32, #tpu.memory_space<vmem>>, vector<8x64xf32>
    tpu.vector_store %arg5[%142, %c0_38], %141 {strides = array<i32>} : memref<64x64xf32, #tpu.memory_space<vmem>>, vector<8x64xf32>,
    %c5_i32 = arith.constant 5 : i32
    %c8_i32_39 = arith.constant 8 : i32
    %144 = arith.muli %c5_i32, %c8_i32_39 : i32
    %145 = tpu.assume_multiple %144, 8 : i32
    %146 = arith.index_cast %145 : i32 to index
    %c0_40 = arith.constant 0 : index
    %147 = vector.load %arg6[%146, %c0_40] : memref<64x256xf32, #tpu.memory_space<vmem>>, vector<8x256xf32>
    %cst_41 = arith.constant dense<0.000000e+00> : vector<8x256xf32>
    %148 = tpu.matmul %138, %7, %cst_41 {dimension_numbers = #tpu.dot_dimension_numbers<[1], [0], [0], [1], [0, 0, 1, 1], [], []>} : vector<8x64xf32>, vector<64x256xf32>, vector<8x256xf32> -> vector<8x256xf32>
    %149 = arith.addf %147, %148 : vector<8x256xf32>
    %150 = vector.extract_strided_slice %149 {offsets = [0, 0], sizes = [8, 192], strides = [1, 1]} : vector<8x256xf32> to vector<8x192xf32>
    %151 = arith.negf %150 : vector<8x192xf32>
    %152 = math.exp %151 : vector<8x192xf32>
    %cst_42 = arith.constant 1.000000e+00 : f32
    %153 = vector.broadcast %cst_42 : f32 to vector<8x192xf32>
    %154 = arith.addf %153, %152 : vector<8x192xf32>
    %155 = arith.divf %153, %154 : vector<8x192xf32>
    %156 = vector.extract_strided_slice %149 {offsets = [0, 192], sizes = [8, 64], strides = [1, 1]} : vector<8x256xf32> to vector<8x64xf32>
    %157 = math.tanh %156 : vector<8x64xf32>
    %158 = vector.extract_strided_slice %155 {offsets = [0, 0], sizes = [8, 64], strides = [1, 1]} : vector<8x192xf32> to vector<8x64xf32>
    %159 = vector.extract_strided_slice %155 {offsets = [0, 64], sizes = [8, 64], strides = [1, 1]} : vector<8x192xf32> to vector<8x64xf32>
    %160 = vector.extract_strided_slice %155 {offsets = [0, 128], sizes = [8, 64], strides = [1, 1]} : vector<8x192xf32> to vector<8x64xf32>
    %161 = arith.mulf %159, %136 : vector<8x64xf32>
    %162 = arith.mulf %158, %157 : vector<8x64xf32>
    %163 = arith.addf %161, %162 : vector<8x64xf32>
    %164 = math.tanh %163 : vector<8x64xf32>
    %165 = arith.mulf %160, %164 : vector<8x64xf32>
    %166 = arith.index_cast %145 : i32 to index
    %c0_43 = arith.constant 0 : index
    %167 = vector.load %arg1[%166, %c0_43] : memref<64x64xf32, #tpu.memory_space<vmem>>, vector<8x64xf32>
    %168 = arith.addf %165, %167 : vector<8x64xf32>
    %169 = arith.index_cast %145 : i32 to index
    %c0_44 = arith.constant 0 : index
    %170 = vector.load %arg5[%169, %c0_44] : memref<64x64xf32, #tpu.memory_space<vmem>>, vector<8x64xf32>
    tpu.vector_store %arg5[%169, %c0_44], %168 {strides = array<i32>} : memref<64x64xf32, #tpu.memory_space<vmem>>, vector<8x64xf32>,
    %c6_i32 = arith.constant 6 : i32
    %c8_i32_45 = arith.constant 8 : i32
    %171 = arith.muli %c6_i32, %c8_i32_45 : i32
    %172 = tpu.assume_multiple %171, 8 : i32
    %173 = arith.index_cast %172 : i32 to index
    %c0_46 = arith.constant 0 : index
    %174 = vector.load %arg6[%173, %c0_46] : memref<64x256xf32, #tpu.memory_space<vmem>>, vector<8x256xf32>
    %cst_47 = arith.constant dense<0.000000e+00> : vector<8x256xf32>
    %175 = tpu.matmul %165, %7, %cst_47 {dimension_numbers = #tpu.dot_dimension_numbers<[1], [0], [0], [1], [0, 0, 1, 1], [], []>} : vector<8x64xf32>, vector<64x256xf32>, vector<8x256xf32> -> vector<8x256xf32>
    %176 = arith.addf %174, %175 : vector<8x256xf32>
    %177 = vector.extract_strided_slice %176 {offsets = [0, 0], sizes = [8, 192], strides = [1, 1]} : vector<8x256xf32> to vector<8x192xf32>
    %178 = arith.negf %177 : vector<8x192xf32>
    %179 = math.exp %178 : vector<8x192xf32>
    %cst_48 = arith.constant 1.000000e+00 : f32
    %180 = vector.broadcast %cst_48 : f32 to vector<8x192xf32>
    %181 = arith.addf %180, %179 : vector<8x192xf32>
    %182 = arith.divf %180, %181 : vector<8x192xf32>
    %183 = vector.extract_strided_slice %176 {offsets = [0, 192], sizes = [8, 64], strides = [1, 1]} : vector<8x256xf32> to vector<8x64xf32>
    %184 = math.tanh %183 : vector<8x64xf32>
    %185 = vector.extract_strided_slice %182 {offsets = [0, 0], sizes = [8, 64], strides = [1, 1]} : vector<8x192xf32> to vector<8x64xf32>
    %186 = vector.extract_strided_slice %182 {offsets = [0, 64], sizes = [8, 64], strides = [1, 1]} : vector<8x192xf32> to vector<8x64xf32>
    %187 = vector.extract_strided_slice %182 {offsets = [0, 128], sizes = [8, 64], strides = [1, 1]} : vector<8x192xf32> to vector<8x64xf32>
    %188 = arith.mulf %186, %163 : vector<8x64xf32>
    %189 = arith.mulf %185, %184 : vector<8x64xf32>
    %190 = arith.addf %188, %189 : vector<8x64xf32>
    %191 = math.tanh %190 : vector<8x64xf32>
    %192 = arith.mulf %187, %191 : vector<8x64xf32>
    %193 = arith.index_cast %172 : i32 to index
    %c0_49 = arith.constant 0 : index
    %194 = vector.load %arg1[%193, %c0_49] : memref<64x64xf32, #tpu.memory_space<vmem>>, vector<8x64xf32>
    %195 = arith.addf %192, %194 : vector<8x64xf32>
    %196 = arith.index_cast %172 : i32 to index
    %c0_50 = arith.constant 0 : index
    %197 = vector.load %arg5[%196, %c0_50] : memref<64x64xf32, #tpu.memory_space<vmem>>, vector<8x64xf32>
    tpu.vector_store %arg5[%196, %c0_50], %195 {strides = array<i32>} : memref<64x64xf32, #tpu.memory_space<vmem>>, vector<8x64xf32>,
    %c7_i32 = arith.constant 7 : i32
    %c8_i32_51 = arith.constant 8 : i32
    %198 = arith.muli %c7_i32, %c8_i32_51 : i32
    %199 = tpu.assume_multiple %198, 8 : i32
    %200 = arith.index_cast %199 : i32 to index
    %c0_52 = arith.constant 0 : index
    %201 = vector.load %arg6[%200, %c0_52] : memref<64x256xf32, #tpu.memory_space<vmem>>, vector<8x256xf32>
    %cst_53 = arith.constant dense<0.000000e+00> : vector<8x256xf32>
    %202 = tpu.matmul %192, %7, %cst_53 {dimension_numbers = #tpu.dot_dimension_numbers<[1], [0], [0], [1], [0, 0, 1, 1], [], []>} : vector<8x64xf32>, vector<64x256xf32>, vector<8x256xf32> -> vector<8x256xf32>
    %203 = arith.addf %201, %202 : vector<8x256xf32>
    %204 = vector.extract_strided_slice %203 {offsets = [0, 0], sizes = [8, 192], strides = [1, 1]} : vector<8x256xf32> to vector<8x192xf32>
    %205 = arith.negf %204 : vector<8x192xf32>
    %206 = math.exp %205 : vector<8x192xf32>
    %cst_54 = arith.constant 1.000000e+00 : f32
    %207 = vector.broadcast %cst_54 : f32 to vector<8x192xf32>
    %208 = arith.addf %207, %206 : vector<8x192xf32>
    %209 = arith.divf %207, %208 : vector<8x192xf32>
    %210 = vector.extract_strided_slice %203 {offsets = [0, 192], sizes = [8, 64], strides = [1, 1]} : vector<8x256xf32> to vector<8x64xf32>
    %211 = math.tanh %210 : vector<8x64xf32>
    %212 = vector.extract_strided_slice %209 {offsets = [0, 0], sizes = [8, 64], strides = [1, 1]} : vector<8x192xf32> to vector<8x64xf32>
    %213 = vector.extract_strided_slice %209 {offsets = [0, 64], sizes = [8, 64], strides = [1, 1]} : vector<8x192xf32> to vector<8x64xf32>
    %214 = vector.extract_strided_slice %209 {offsets = [0, 128], sizes = [8, 64], strides = [1, 1]} : vector<8x192xf32> to vector<8x64xf32>
    %215 = arith.mulf %213, %190 : vector<8x64xf32>
    %216 = arith.mulf %212, %211 : vector<8x64xf32>
    %217 = arith.addf %215, %216 : vector<8x64xf32>
    %218 = math.tanh %217 : vector<8x64xf32>
    %219 = arith.mulf %214, %218 : vector<8x64xf32>
    %220 = arith.index_cast %199 : i32 to index
    %c0_55 = arith.constant 0 : index
    %221 = vector.load %arg1[%220, %c0_55] : memref<64x64xf32, #tpu.memory_space<vmem>>, vector<8x64xf32>
    %222 = arith.addf %219, %221 : vector<8x64xf32>
    %223 = arith.index_cast %199 : i32 to index
    %c0_56 = arith.constant 0 : index
    %224 = vector.load %arg5[%223, %c0_56] : memref<64x64xf32, #tpu.memory_space<vmem>>, vector<8x64xf32>
    tpu.vector_store %arg5[%223, %c0_56], %222 {strides = array<i32>} : memref<64x64xf32, #tpu.memory_space<vmem>>, vector<8x64xf32>,
    %c8_i32_57 = arith.constant 8 : i32
    return
  }
}

</mosaic_0001>

<llo_original>
// kernel: tpu_custom_call.1
$region0: #{tpu_custom_call.1}
  #allocation0 [shape = 'u32[]', space=smem, size = 0x4, offset = 0x4, fixed_abs, tag = 'smem constant byte address 0x4 - core index']
  #allocation1 [shape = 'u32[144,128]{1,0:T(1,128)}', space=vmem, size = 0x12000, scoped, tag = 'internal scratch']
  #allocation2 [shape = 'f32[64,256]{1,0:T(8,128)}', space=vmem, size = 0x10000, scoped, tag = 'scratch operand']
  %s0 = inlined_call_operand.hbm [shape: f32[64,128], index: 0, kind: input, shape index: {}]
  %s1 = inlined_call_operand.hbm [shape: f32[64,64], index: 1, kind: input, shape index: {}]
  %s2 = inlined_call_operand.hbm [shape: f32[128,256], index: 2, kind: input, shape index: {}]
  %s3 = inlined_call_operand.vmem [shape: f32[1,256], index: 3, kind: input, shape index: {}]
  %s4 = inlined_call_operand.hbm [shape: f32[64,256], index: 4, kind: input, shape index: {}]
  %s5 = inlined_call_operand.hbm [shape: f32[64,64], index: 5, kind: output, shape index: {}]
  %s6 = sld [smem:[#allocation0]]
  $region46: #{tpu_custom_call.1} parent=0
    _
  %s8 = ssub.s32 1, %s6
  %s9 = scalar_select 0, %s8, %s6
  $region1: #{tpu_custom_call.1} parent=0
    #allocation3 [shape = 'u8[32768]{0}', space=vmem, size = 0x8000, scoped, tag = 'input window, operand 0, single buffered']
    #allocation4 [shape = 's32[1]{0}', space=sflag, size = 0x4, scoped, tag = 'scoped memory for tpu_custom_call.1']
    #allocation5 [shape = 's32[1]{0}', space=sflag, size = 0x4, scoped, tag = 'scoped memory for tpu_custom_call.1']
    #allocation6 [shape = 'u8[32768]{0}', space=vmem, size = 0x8000, scoped, tag = 'input window, operand 1, single buffered']
    #allocation7 [shape = 's32[1]{0}', space=sflag, size = 0x4, scoped, tag = 'scoped memory for tpu_custom_call.1']
    #allocation8 [shape = 'u8[131072]{0}', space=vmem, size = 0x20000, scoped, tag = 'input window, operand 2, single buffered']
    #allocation9 [shape = 'u8[65536]{0}', space=vmem, size = 0x10000, scoped, tag = 'input window, operand 4, single buffered']
    #allocation10 [shape = 's32[1]{0}', space=sflag, size = 0x4, scoped, tag = 'scoped memory for tpu_custom_call.1']
    #allocation11 [shape = 'u8[32768]{0}', space=vmem, size = 0x8000, scoped, tag = 'output window, operand 0, single buffered']
    %10 = vsyncpa [#allocation4], 0
    %11 = vsyncpa [#allocation7], 0
    %12 = vsyncpa [#allocation10], 0
    %13 = vsyncpa [#allocation5], 0
    // Predicated region
    $region2: #{tpu_custom_call.1} parent=1 // pred_check
      _
    $region3: #{tpu_custom_call.1} parent=1 // pred_check_branch
      %15 = sbr.rel (0) target = $region5
    $region4: #{tpu_custom_call.1} parent=1 // pred_region
      %s17 = ssub.s32 1024, 1024
      %18 = vsyncadd [#allocation4], %s17
      %s19 = sshll.u32 [#allocation3], 4
      %s20 = int_to_ptr.vmem [resolvable:$true] %s19
      %25 = dma.hbm_to_vmem [thread:$0]  %s0, 1024, %s20, [#allocation4], 128, 128, 8
    $region5: #{tpu_custom_call.1} parent=1 // pred_fallthru
      _
    // Predicated region
    $region6: #{tpu_custom_call.1} parent=1 // pred_check
      _
    $region7: #{tpu_custom_call.1} parent=1 // pred_check_branch
      %27 = sbr.rel (0) target = $region9
    $region8: #{tpu_custom_call.1} parent=1 // pred_region
      %s29 = ssub.s32 1024, 1024
      %30 = vsyncadd [#allocation7], %s29
      %s31 = sshll.u32 [#allocation6], 4
      %s32 = int_to_ptr.vmem [resolvable:$true] %s31
      %37 = dma.hbm_to_vmem [thread:$0]  %s1, 1024, %s32, [#allocation7], 128, 128, 8
    $region9: #{tpu_custom_call.1} parent=1 // pred_fallthru
      _
    // Predicated region
    $region10: #{tpu_custom_call.1} parent=1 // pred_check
      _
    $region11: #{tpu_custom_call.1} parent=1 // pred_check_branch
      %39 = sbr.rel (0) target = $region13
    $region12: #{tpu_custom_call.1} parent=1 // pred_region
      %s41 = ssub.s32 4096, 4096
      %42 = vsyncadd [#allocation7], %s41
      %s43 = sshll.u32 [#allocation8], 4
      %s44 = int_to_ptr.vmem [resolvable:$true] %s43
      %49 = dma.hbm_to_vmem [thread:$0]  %s2, 4096, %s44, [#allocation7], 256, 256, 16
    $region13: #{tpu_custom_call.1} parent=1 // pred_fallthru
      _
    // Predicated region
    $region14: #{tpu_custom_call.1} parent=1 // pred_check
      _
    $region15: #{tpu_custom_call.1} parent=1 // pred_check_branch
      %51 = sbr.rel (0) target = $region17
    $region16: #{tpu_custom_call.1} parent=1 // pred_region
      _
    $region17: #{tpu_custom_call.1} parent=1 // pred_fallthru
      _
    // Predicated region
    $region18: #{tpu_custom_call.1} parent=1 // pred_check
      _
    $region19: #{tpu_custom_call.1} parent=1 // pred_check_branch
      %53 = sbr.rel (0) target = $region21
    $region20: #{tpu_custom_call.1} parent=1 // pred_region
      %s55 = ssub.s32 2048, 2048
      %56 = vsyncadd [#allocation10], %s55
      %s57 = sshll.u32 [#allocation9], 4
      %s58 = int_to_ptr.vmem [resolvable:$true] %s57
      %63 = dma.hbm_to_vmem [thread:$0]  %s4, 2048, %s58, [#allocation10], 256, 256, 16
    $region21: #{tpu_custom_call.1} parent=1 // pred_fallthru
      _
    // Predicated region
    $region22: #{tpu_custom_call.1} parent=1 // pred_check
      _
    $region23: #{tpu_custom_call.1} parent=1 // pred_check_branch
      %65 = sbr.rel (0) target = $region25
    $region24: #{tpu_custom_call.1} parent=1 // pred_region
      %66 = dma.done [#allocation4], 1024
    $region25: #{tpu_custom_call.1} parent=1 // pred_fallthru
      _
    // Predicated region
    $region26: #{tpu_custom_call.1} parent=1 // pred_check
      _
    $region27: #{tpu_custom_call.1} parent=1 // pred_check_branch
      %68 = sbr.rel (0) target = $region29
    $region28: #{tpu_custom_call.1} parent=1 // pred_region
      %69 = dma.done [#allocation7], 1024
    $region29: #{tpu_custom_call.1} parent=1 // pred_fallthru
      _
    // Predicated region
    $region30: #{tpu_custom_call.1} parent=1 // pred_check
      _
    $region31: #{tpu_custom_call.1} parent=1 // pred_check_branch
      %71 = sbr.rel (0) target = $region33
    $region32: #{tpu_custom_call.1} parent=1 // pred_region
      %72 = dma.done [#allocation7], 4096
    $region33: #{tpu_custom_call.1} parent=1 // pred_fallthru
      _
    // Predicated region
    $region34: #{tpu_custom_call.1} parent=1 // pred_check
      _
    $region35: #{tpu_custom_call.1} parent=1 // pred_check_branch
      %74 = sbr.rel (0) target = $region37
    $region36: #{tpu_custom_call.1} parent=1 // pred_region
      %75 = dma.done [#allocation10], 2048
    $region37: #{tpu_custom_call.1} parent=1 // pred_fallthru
      _
    %v76 = vld [vmem:[#allocation3] sm:$0xff]
    %v77 = vld [vmem:[#allocation3 + $0x8] sm:$0xff]
    %v78 = vld [vmem:[#allocation3 + $0x10] sm:$0xff]
    %v79 = vld [vmem:[#allocation3 + $0x18] sm:$0xff]
    %v80 = vld [vmem:[#allocation3 + $0x20] sm:$0xff]
    %v81 = vld [vmem:[#allocation3 + $0x28] sm:$0xff]
    %v82 = vld [vmem:[#allocation3 + $0x30] sm:$0xff]
    %v83 = vld [vmem:[#allocation3 + $0x38] sm:$0xff]
    %v84 = vld [vmem:[#allocation8] sm:$0xff]
    %v85 = vld [vmem:[#allocation8 + $0x8] sm:$0xff]
    %v86 = vld [vmem:[#allocation8 + $0x10] sm:$0xff]
    %v87 = vld [vmem:[#allocation8 + $0x18] sm:$0xff]
    %v88 = vld [vmem:[#allocation8 + $0x20] sm:$0xff]
    %v89 = vld [vmem:[#allocation8 + $0x28] sm:$0xff]
    %v90 = vld [vmem:[#allocation8 + $0x30] sm:$0xff]
    %v91 = vld [vmem:[#allocation8 + $0x38] sm:$0xff]
    %v92 = vld [vmem:[#allocation8 + $0x40] sm:$0xff]
    %v93 = vld [vmem:[#allocation8 + $0x48] sm:$0xff]
    %v94 = vld [vmem:[#allocation8 + $0x50] sm:$0xff]
    %v95 = vld [vmem:[#allocation8 + $0x58] sm:$0xff]
    %v96 = vld [vmem:[#allocation8 + $0x60] sm:$0xff]
    %v97 = vld [vmem:[#allocation8 + $0x68] sm:$0xff]
    %v98 = vld [vmem:[#allocation8 + $0x70] sm:$0xff]
    %v99 = vld [vmem:[#allocation8 + $0x78] sm:$0xff]
    %v100 = vld [vmem:[#allocation8 + $0x80] sm:$0xff]
    %v101 = vld [vmem:[#allocation8 + $0x88] sm:$0xff]
    %v102 = vld [vmem:[#allocation8 + $0x90] sm:$0xff]
    %v103 = vld [vmem:[#allocation8 + $0x98] sm:$0xff]
    %v104 = vld [vmem:[#allocation8 + $0xa0] sm:$0xff]
    %v105 = vld [vmem:[#allocation8 + $0xa8] sm:$0xff]
    %v106 = vld [vmem:[#allocation8 + $0xb0] sm:$0xff]
    %v107 = vld [vmem:[#allocation8 + $0xb8] sm:$0xff]
    %v108 = vld [vmem:[#allocation8 + $0xc0] sm:$0xff]
    %v109 = vld [vmem:[#allocation8 + $0xc8] sm:$0xff]
    %v110 = vld [vmem:[#allocation8 + $0xd0] sm:$0xff]
    %v111 = vld [vmem:[#allocation8 + $0xd8] sm:$0xff]
    %v112 = vld [vmem:[#allocation8 + $0xe0] sm:$0xff]
    %v113 = vld [vmem:[#allocation8 + $0xe8] sm:$0xff]
    %v114 = vld [vmem:[#allocation8 + $0xf0] sm:$0xff]
    %v115 = vld [vmem:[#allocation8 + $0xf8] sm:$0xff]
    %v116 = vld [vmem:[%s3] sm:$0x3]
    %v118 = vlaneseq
    %v119 = vshrl.u32 %v118, 7
    %v120 = vsub.s32 0, %v119
    %v121 = vrot.slane %v116, %v120
    %v122 = vlaneseq
    %v123 = vshrl.u32 %v122, 7
    %v124 = vsub.s32 1, %v123
    %v125 = vrot.slane %v116, %v124
    %128 = vmatprep.subr.mxu0 %v85
    %129 = vmatpush1.msra.mxu0 %v84
    %130 = vmatprep.subr.mxu0 %v87
    %131 = vmatpush1.msra.mxu0 %v86
    %132 = vmatprep.subr.mxu0 %v89
    %133 = vmatpush1.msra.mxu0 %v88
    %134 = vmatprep.subr.mxu0 %v91
    %135 = vmatpush1.msra.mxu0 %v90
    %136 = vmatprep.subr.mxu0 %v93
    %137 = vmatpush1.msra.mxu0 %v92
    %138 = vmatprep.subr.mxu0 %v95
    %139 = vmatpush1.msra.mxu0 %v94
    %140 = vmatprep.subr.mxu0 %v97
    %141 = vmatpush1.msra.mxu0 %v96
    %142 = vmatprep.subr.mxu0 %v99
    %143 = vmatpush1.msra.mxu0 %v98
    %144 = vmatprep.subr.mxu0 %v101
    %145 = vmatpush1.msra.mxu0 %v100
    %146 = vmatprep.subr.mxu0 %v103
    %147 = vmatpush1.msra.mxu0 %v102
    %148 = vmatprep.subr.mxu0 %v105
    %149 = vmatpush1.msra.mxu0 %v104
    %150 = vmatprep.subr.mxu0 %v107
    %151 = vmatpush1.msra.mxu0 %v106
    %152 = vmatprep.subr.mxu0 %v109
    %153 = vmatpush1.msra.mxu0 %v108
    %154 = vmatprep.subr.mxu0 %v111
    %155 = vmatpush1.msra.mxu0 %v110
    %156 = vmatprep.subr.mxu0 %v113
    %157 = vmatpush1.msra.mxu0 %v112
    %158 = vmatprep.subr.mxu0 %v115
    %159 = vmatpush1.msra.mxu0 %v114
    %160 = vmatprep.subr.mxu0 0.0
    %161 = vmatpush1.msra.mxu0 0.0
    %162 = vmatprep.subr.mxu0 0.0
    %163 = vmatpush1.msra.mxu0 0.0
    %164 = vmatprep.subr.mxu0 0.0
    %165 = vmatpush1.msra.mxu0 0.0
    %166 = vmatprep.subr.mxu0 0.0
    %167 = vmatpush1.msra.mxu0 0.0
    %168 = vmatprep.subr.mxu0 0.0
    %169 = vmatpush1.msra.mxu0 0.0
    %170 = vmatprep.subr.mxu0 0.0
    %171 = vmatpush1.msra.mxu0 0.0
    %172 = vmatprep.subr.mxu0 0.0
    %173 = vmatpush1.msra.mxu0 0.0
    %174 = vmatprep.subr.mxu0 0.0
    %175 = vmatpush1.msra.mxu0 0.0
    %176 = vmatprep.subr.mxu0 0.0
    %177 = vmatpush1.msra.mxu0 0.0
    %178 = vmatprep.subr.mxu0 0.0
    %179 = vmatpush1.msra.mxu0 0.0
    %180 = vmatprep.subr.mxu0 0.0
    %181 = vmatpush1.msra.mxu0 0.0
    %182 = vmatprep.subr.mxu0 0.0
    %183 = vmatpush1.msra.mxu0 0.0
    %184 = vmatprep.subr.mxu0 0.0
    %185 = vmatpush1.msra.mxu0 0.0
    %186 = vmatprep.subr.mxu0 0.0
    %187 = vmatpush1.msra.mxu0 0.0
    %188 = vmatprep.subr.mxu0 0.0
    %189 = vmatpush1.msra.mxu0 0.0
    %190 = vmatprep.subr.mxu0 0.0
    %191 = vmatpush1.msra.mxu0 0.0
    %192 = vmatprep.mubr.f32.mxu0 0.0
    %193 = vmatmul.mubr.f32.gmra.mrb[0].mxu0 %v76
    %v194 = vpop.f32.mrb[0].mxu0
    %v195 = vadd.f32 %v121, %v194
    %v196 = vpop.f32.mrb[0].mxu0
    %v197 = vadd.f32 %v125, %v196
    %198 = vmatprep.mubr.f32.mxu0 0.0
    %199 = vmatmul.mubr.f32.gmra.mrb[0].mxu0 %v77
    %v200 = vpop.f32.mrb[0].mxu0
    %v201 = vadd.f32 %v121, %v200
    %v202 = vpop.f32.mrb[0].mxu0
    %v203 = vadd.f32 %v125, %v202
    %204 = vmatprep.mubr.f32.mxu0 0.0
    %205 = vmatmul.mubr.f32.gmra.mrb[0].mxu0 %v78
    %v206 = vpop.f32.mrb[0].mxu0
    %v207 = vadd.f32 %v121, %v206
    %v208 = vpop.f32.mrb[0].mxu0
    %v209 = vadd.f32 %v125, %v208
    %210 = vmatprep.mubr.f32.mxu0 0.0
    %211 = vmatmul.mubr.f32.gmra.mrb[0].mxu0 %v79
    %v212 = vpop.f32.mrb[0].mxu0
    %v213 = vadd.f32 %v121, %v212
    %v214 = vpop.f32.mrb[0].mxu0
    %v215 = vadd.f32 %v125, %v214
    %216 = vmatprep.mubr.f32.mxu0 0.0
    %217 = vmatmul.mubr.f32.gmra.mrb[0].mxu0 %v80
    %v218 = vpop.f32.mrb[0].mxu0
    %v219 = vadd.f32 %v121, %v218
    %v220 = vpop.f32.mrb[0].mxu0
    %v221 = vadd.f32 %v125, %v220
    %222 = vmatprep.mubr.f32.mxu0 0.0
    %223 = vmatmul.mubr.f32.gmra.mrb[0].mxu0 %v81
    %v224 = vpop.f32.mrb[0].mxu0
    %v225 = vadd.f32 %v121, %v224
    %v226 = vpop.f32.mrb[0].mxu0
    %v227 = vadd.f32 %v125, %v226
    %228 = vmatprep.mubr.f32.mxu0 0.0
    %229 = vmatmul.mubr.f32.gmra.mrb[0].mxu0 %v82
    %v230 = vpop.f32.mrb[0].mxu0
    %v231 = vadd.f32 %v121, %v230
    %v232 = vpop.f32.mrb[0].mxu0
    %v233 = vadd.f32 %v125, %v232
    %234 = vmatprep.mubr.f32.mxu0 0.0
    %235 = vmatmul.mubr.f32.gmra.mrb[0].mxu0 %v83
    %v236 = vpop.f32.mrb[0].mxu0
    %v237 = vadd.f32 %v121, %v236
    %v238 = vpop.f32.mrb[0].mxu0
    %v239 = vadd.f32 %v125, %v238
    %240 = vdwg.mxu0
    %241 = vst [vmem:[#allocation2] sm:$0xff] %v195
    %242 = vst [vmem:[#allocation2 + $0x8] sm:$0xff] %v197
    %243 = vst [vmem:[#allocation2 + $0x10] sm:$0xff] %v201
    %244 = vst [vmem:[#allocation2 + $0x18] sm:$0xff] %v203
    %245 = vst [vmem:[#allocation2 + $0x20] sm:$0xff] %v207
    %246 = vst [vmem:[#allocation2 + $0x28] sm:$0xff] %v209
    %247 = vst [vmem:[#allocation2 + $0x30] sm:$0xff] %v213
    %248 = vst [vmem:[#allocation2 + $0x38] sm:$0xff] %v215
    %249 = vst [vmem:[#allocation2 + $0x40] sm:$0xff] %v219
    %250 = vst [vmem:[#allocation2 + $0x48] sm:$0xff] %v221
    %251 = vst [vmem:[#allocation2 + $0x50] sm:$0xff] %v225
    %252 = vst [vmem:[#allocation2 + $0x58] sm:$0xff] %v227
    %253 = vst [vmem:[#allocation2 + $0x60] sm:$0xff] %v231
    %254 = vst [vmem:[#allocation2 + $0x68] sm:$0xff] %v233
    %255 = vst [vmem:[#allocation2 + $0x70] sm:$0xff] %v237
    %256 = vst [vmem:[#allocation2 + $0x78] sm:$0xff] %v239
    %v257 = vld [vmem:[#allocation9] sm:$0xff]
    %v258 = vld [vmem:[#allocation9 + $0x8] sm:$0xff]
    %v259 = vld [vmem:[#allocation9 + $0x10] sm:$0xff]
    %v260 = vld [vmem:[#allocation9 + $0x18] sm:$0xff]
    %v261 = vld [vmem:[#allocation9 + $0x20] sm:$0xff]
    %v262 = vld [vmem:[#allocation9 + $0x28] sm:$0xff]
    %v263 = vld [vmem:[#allocation9 + $0x30] sm:$0xff]
    %v264 = vld [vmem:[#allocation9 + $0x38] sm:$0xff]
    %v265 = vld [vmem:[#allocation9 + $0x40] sm:$0xff]
    %v266 = vld [vmem:[#allocation9 + $0x48] sm:$0xff]
    %v267 = vld [vmem:[#allocation9 + $0x50] sm:$0xff]
    %v268 = vld [vmem:[#allocation9 + $0x58] sm:$0xff]
    %v269 = vld [vmem:[#allocation9 + $0x60] sm:$0xff]
    %v270 = vld [vmem:[#allocation9 + $0x68] sm:$0xff]
    %v271 = vld [vmem:[#allocation9 + $0x70] sm:$0xff]
    %v272 = vld [vmem:[#allocation9 + $0x78] sm:$0xff]
    %s273 = smul.u32 0, 2
    %s274 = smul.addr %s273, 8
    %s275 = scalar_lea.vmem [#allocation2], %s274
    %v276 = vld [vmem:[%s275] sm:$0xff]
    %v277 = vld [vmem:[%s275 + $0x8] sm:$0xff]
    %vm278 = vcmask 523264
    %v280 = vsel %vm278, 0.0, 0
    %282 = vmatprep.subr.mxu0 %v258
    %283 = vmatpush1.msra.mxu0 %v257
    %284 = vmatprep.subr.mxu0 %v260
    %285 = vmatpush1.msra.mxu0 %v259
    %286 = vmatprep.subr.mxu0 %v262
    %287 = vmatpush1.msra.mxu0 %v261
    %288 = vmatprep.subr.mxu0 %v264
    %289 = vmatpush1.msra.mxu0 %v263
    %290 = vmatprep.subr.mxu0 %v266
    %291 = vmatpush1.msra.mxu0 %v265
    %292 = vmatprep.subr.mxu0 %v268
    %293 = vmatpush1.msra.mxu0 %v267
    %294 = vmatprep.subr.mxu0 %v270
    %295 = vmatpush1.msra.mxu0 %v269
    %296 = vmatprep.subr.mxu0 %v272
    %297 = vmatpush1.msra.mxu0 %v271
    %298 = vmatprep.subr.mxu0 0.0
    %299 = vmatpush1.msra.mxu0 0.0
    %300 = vmatprep.subr.mxu0 0.0
    %301 = vmatpush1.msra.mxu0 0.0
    %302 = vmatprep.subr.mxu0 0.0
    %303 = vmatpush1.msra.mxu0 0.0
    %304 = vmatprep.subr.mxu0 0.0
    %305 = vmatpush1.msra.mxu0 0.0
    %306 = vmatprep.subr.mxu0 0.0
    %307 = vmatpush1.msra.mxu0 0.0
    %308 = vmatprep.subr.mxu0 0.0
    %309 = vmatpush1.msra.mxu0 0.0
    %310 = vmatprep.subr.mxu0 0.0
    %311 = vmatpush1.msra.mxu0 0.0
    %312 = vmatprep.subr.mxu0 0.0
    %313 = vmatpush1.msra.mxu0 0.0
    %314 = vmatprep.subr.mxu0 0.0
    %315 = vmatpush1.msra.mxu0 0.0
    %316 = vmatprep.subr.mxu0 0.0
    %317 = vmatpush1.msra.mxu0 0.0
    %318 = vmatprep.subr.mxu0 0.0
    %319 = vmatpush1.msra.mxu0 0.0
    %320 = vmatprep.subr.mxu0 0.0
    %321 = vmatpush1.msra.mxu0 0.0
    %322 = vmatprep.subr.mxu0 0.0
    %323 = vmatpush1.msra.mxu0 0.0
    %324 = vmatprep.subr.mxu0 0.0
    %325 = vmatpush1.msra.mxu0 0.0
    %326 = vmatprep.subr.mxu0 0.0
    %327 = vmatpush1.msra.mxu0 0.0
    %328 = vmatprep.subr.mxu0 0.0
    %329 = vmatpush1.msra.mxu0 0.0
    %330 = vmatprep.subr.mxu0 0.0
    %331 = vmatpush1.msra.mxu0 0.0
    %332 = vmatprep.subr.mxu0 0.0
    %333 = vmatpush1.msra.mxu0 0.0
    %334 = vmatprep.subr.mxu0 0.0
    %335 = vmatpush1.msra.mxu0 0.0
    %336 = vmatprep.subr.mxu0 0.0
    %337 = vmatpush1.msra.mxu0 0.0
    %338 = vmatprep.subr.mxu0 0.0
    %339 = vmatpush1.msra.mxu0 0.0
    %340 = vmatprep.subr.mxu0 0.0
    %341 = vmatpush1.msra.mxu0 0.0
    %342 = vmatprep.subr.mxu0 0.0
    %343 = vmatpush1.msra.mxu0 0.0
    %344 = vmatprep.subr.mxu0 0.0
    %345 = vmatpush1.msra.mxu0 0.0
    %346 = vmatprep.mubr.f32.mxu0 0.0
    %347 = vmatmul.mubr.f32.gmra.mrb[0].mxu0 %v280
    %v348 = vpop.f32.mrb[0].mxu0
    %v349 = vadd.f32 0.0, %v348
    %v350 = vpop.f32.mrb[0].mxu0
    %v351 = vadd.f32 0.0, %v350
    %352 = vdwg.mxu0
    %v353 = vadd.f32 %v276, %v349
    %v354 = vadd.f32 %v277, %v351
    %v355 = vxor.u32 %v353, 2147483648
    %v356 = vxor.u32 %v354, 2147483648
    %v357 = vmul.f32 %v355, 1.442695
    %v358 = vpow.pop %v357
    %v359 = vmul.f32 %v356, 1.442695
    %v360 = vpow.pop %v359
    %v361 = vadd.f32 %v358, 1.0
    %v362 = vadd.f32 %v360, 1.0
    %v363 = vrcp.pop %v361
    %v364 = vmul.f32 1.0, %v363
    %v365 = vrcp.pop %v362
    %v366 = vmul.f32 1.0, %v365
    %v367 = vtanh.pop %v354
    %v368 = vmul.f32 %v364, 0.0
    %370 = vrot.lane.b32.xlu0 %v367, 64
    %v371 = vpop.permute.xlu0 %370
    %v373 = vmul.f32 %v364, %v371
    %375 = vrot.lane.b32.xlu0 %v373, 64
    %v376 = vpop.permute.xlu0 %375
    %v378 = vadd.f32 %v368, %v376
    %v379 = vtanh.pop %v378
    %381 = vrot.lane.b32.xlu0 %v379, 64
    %v382 = vpop.permute.xlu0 %381
    %v384 = vmul.f32 %v366, %v382
    %v385 = vld [vmem:[#allocation6] sm:$0xff]
    %v386 = vadd.f32 %v384, %v385
    %387 = vst.msk [vmem:[#allocation11] sm:$0xff] %vm278, %v386
    %s388 = smul.u32 1, 2
    %s389 = smul.addr %s388, 8
    %s390 = scalar_lea.vmem [#allocation2], %s389
    %v391 = vld [vmem:[%s390] sm:$0xff]
    %v392 = vld [vmem:[%s390 + $0x8] sm:$0xff]
    %v394 = vsel %vm278, %v384, 0
    %396 = vmatprep.subr.mxu0 %v258
    %397 = vmatpush1.msra.mxu0 %v257
    %398 = vmatprep.subr.mxu0 %v260
    %399 = vmatpush1.msra.mxu0 %v259
    %400 = vmatprep.subr.mxu0 %v262
    %401 = vmatpush1.msra.mxu0 %v261
    %402 = vmatprep.subr.mxu0 %v264
    %403 = vmatpush1.msra.mxu0 %v263
    %404 = vmatprep.subr.mxu0 %v266
    %405 = vmatpush1.msra.mxu0 %v265
    %406 = vmatprep.subr.mxu0 %v268
    %407 = vmatpush1.msra.mxu0 %v267
    %408 = vmatprep.subr.mxu0 %v270
    %409 = vmatpush1.msra.mxu0 %v269
    %410 = vmatprep.subr.mxu0 %v272
    %411 = vmatpush1.msra.mxu0 %v271
    %412 = vmatprep.subr.mxu0 0.0
    %413 = vmatpush1.msra.mxu0 0.0
    %414 = vmatprep.subr.mxu0 0.0
    %415 = vmatpush1.msra.mxu0 0.0
    %416 = vmatprep.subr.mxu0 0.0
    %417 = vmatpush1.msra.mxu0 0.0
    %418 = vmatprep.subr.mxu0 0.0
    %419 = vmatpush1.msra.mxu0 0.0
    %420 = vmatprep.subr.mxu0 0.0
    %421 = vmatpush1.msra.mxu0 0.0
    %422 = vmatprep.subr.mxu0 0.0
    %423 = vmatpush1.msra.mxu0 0.0
    %424 = vmatprep.subr.mxu0 0.0
    %425 = vmatpush1.msra.mxu0 0.0
    %426 = vmatprep.subr.mxu0 0.0
    %427 = vmatpush1.msra.mxu0 0.0
    %428 = vmatprep.subr.mxu0 0.0
    %429 = vmatpush1.msra.mxu0 0.0
    %430 = vmatprep.subr.mxu0 0.0
    %431 = vmatpush1.msra.mxu0 0.0
    %432 = vmatprep.subr.mxu0 0.0
    %433 = vmatpush1.msra.mxu0 0.0
    %434 = vmatprep.subr.mxu0 0.0
    %435 = vmatpush1.msra.mxu0 0.0
    %436 = vmatprep.subr.mxu0 0.0
    %437 = vmatpush1.msra.mxu0 0.0
    %438 = vmatprep.subr.mxu0 0.0
    %439 = vmatpush1.msra.mxu0 0.0
    %440 = vmatprep.subr.mxu0 0.0
    %441 = vmatpush1.msra.mxu0 0.0
    %442 = vmatprep.subr.mxu0 0.0
    %443 = vmatpush1.msra.mxu0 0.0
    %444 = vmatprep.subr.mxu0 0.0
    %445 = vmatpush1.msra.mxu0 0.0
    %446 = vmatprep.subr.mxu0 0.0
    %447 = vmatpush1.msra.mxu0 0.0
    %448 = vmatprep.subr.mxu0 0.0
    %449 = vmatpush1.msra.mxu0 0.0
    %450 = vmatprep.subr.mxu0 0.0
    %451 = vmatpush1.msra.mxu0 0.0
    %452 = vmatprep.subr.mxu0 0.0
    %453 = vmatpush1.msra.mxu0 0.0
    %454 = vmatprep.subr.mxu0 0.0
    %455 = vmatpush1.msra.mxu0 0.0
    %456 = vmatprep.subr.mxu0 0.0
    %457 = vmatpush1.msra.mxu0 0.0
    %458 = vmatprep.subr.mxu0 0.0
    %459 = vmatpush1.msra.mxu0 0.0
    %460 = vmatprep.mubr.f32.mxu0 0.0
    %461 = vmatmul.mubr.f32.gmra.mrb[0].mxu0 %v394
    %v462 = vpop.f32.mrb[0].mxu0
    %v463 = vadd.f32 0.0, %v462
    %v464 = vpop.f32.mrb[0].mxu0
    %v465 = vadd.f32 0.0, %v464
    %466 = vdwg.mxu0
    %v467 = vadd.f32 %v391, %v463
    %v468 = vadd.f32 %v392, %v465
    %v469 = vxor.u32 %v467, 2147483648
    %v470 = vxor.u32 %v468, 2147483648
    %v471 = vmul.f32 %v469, 1.442695
    %v472 = vpow.pop %v471
    %v473 = vmul.f32 %v470, 1.442695
    %v474 = vpow.pop %v473
    %v475 = vadd.f32 %v472, 1.0
    %v476 = vadd.f32 %v474, 1.0
    %v477 = vrcp.pop %v475
    %v478 = vmul.f32 1.0, %v477
    %v479 = vrcp.pop %v476
    %v480 = vmul.f32 1.0, %v479
    %v481 = vtanh.pop %v468
    %v482 = vmul.f32 %v478, %v378
    %484 = vrot.lane.b32.xlu0 %v481, 64
    %v485 = vpop.permute.xlu0 %484
    %v487 = vmul.f32 %v478, %v485
    %489 = vrot.lane.b32.xlu0 %v487, 64
    %v490 = vpop.permute.xlu0 %489
    %v492 = vadd.f32 %v482, %v490
    %v493 = vtanh.pop %v492
    %495 = vrot.lane.b32.xlu0 %v493, 64
    %v496 = vpop.permute.xlu0 %495
    %v498 = vmul.f32 %v480, %v496
    %s499 = scalar_lea.vmem [#allocation6], 8
    %v500 = vld [vmem:[%s499] sm:$0xff]
    %v501 = vadd.f32 %v498, %v500
    %s502 = scalar_lea.vmem [#allocation11], 8
    %503 = vst.msk [vmem:[%s502] sm:$0xff] %vm278, %v501
    %s504 = smul.u32 2, 2
    %s505 = smul.addr %s504, 8
    %s506 = scalar_lea.vmem [#allocation2], %s505
    %v507 = vld [vmem:[%s506] sm:$0xff]
    %v508 = vld [vmem:[%s506 + $0x8] sm:$0xff]
    %v510 = vsel %vm278, %v498, 0
    %512 = vmatprep.subr.mxu0 %v258
    %513 = vmatpush1.msra.mxu0 %v257
    %514 = vmatprep.subr.mxu0 %v260
    %515 = vmatpush1.msra.mxu0 %v259
    %516 = vmatprep.subr.mxu0 %v262
    %517 = vmatpush1.msra.mxu0 %v261
    %518 = vmatprep.subr.mxu0 %v264
    %519 = vmatpush1.msra.mxu0 %v263
    %520 = vmatprep.subr.mxu0 %v266
    %521 = vmatpush1.msra.mxu0 %v265
    %522 = vmatprep.subr.mxu0 %v268
    %523 = vmatpush1.msra.mxu0 %v267
    %524 = vmatprep.subr.mxu0 %v270
    %525 = vmatpush1.msra.mxu0 %v269
    %526 = vmatprep.subr.mxu0 %v272
    %527 = vmatpush1.msra.mxu0 %v271
    %528 = vmatprep.subr.mxu0 0.0
    %529 = vmatpush1.msra.mxu0 0.0
    %530 = vmatprep.subr.mxu0 0.0
    %531 = vmatpush1.msra.mxu0 0.0
    %532 = vmatprep.subr.mxu0 0.0
    %533 = vmatpush1.msra.mxu0 0.0
    %534 = vmatprep.subr.mxu0 0.0
    %535 = vmatpush1.msra.mxu0 0.0
    %536 = vmatprep.subr.mxu0 0.0
    %537 = vmatpush1.msra.mxu0 0.0
    %538 = vmatprep.subr.mxu0 0.0
    %539 = vmatpush1.msra.mxu0 0.0
    %540 = vmatprep.subr.mxu0 0.0
    %541 = vmatpush1.msra.mxu0 0.0
    %542 = vmatprep.subr.mxu0 0.0
    %543 = vmatpush1.msra.mxu0 0.0
    %544 = vmatprep.subr.mxu0 0.0
    %545 = vmatpush1.msra.mxu0 0.0
    %546 = vmatprep.subr.mxu0 0.0
    %547 = vmatpush1.msra.mxu0 0.0
    %548 = vmatprep.subr.mxu0 0.0
    %549 = vmatpush1.msra.mxu0 0.0
    %550 = vmatprep.subr.mxu0 0.0
    %551 = vmatpush1.msra.mxu0 0.0
    %552 = vmatprep.subr.mxu0 0.0
    %553 = vmatpush1.msra.mxu0 0.0
    %554 = vmatprep.subr.mxu0 0.0
    %555 = vmatpush1.msra.mxu0 0.0
    %556 = vmatprep.subr.mxu0 0.0
    %557 = vmatpush1.msra.mxu0 0.0
    %558 = vmatprep.subr.mxu0 0.0
    %559 = vmatpush1.msra.mxu0 0.0
    %560 = vmatprep.subr.mxu0 0.0
    %561 = vmatpush1.msra.mxu0 0.0
    %562 = vmatprep.subr.mxu0 0.0
    %563 = vmatpush1.msra.mxu0 0.0
    %564 = vmatprep.subr.mxu0 0.0
    %565 = vmatpush1.msra.mxu0 0.0
    %566 = vmatprep.subr.mxu0 0.0
    %567 = vmatpush1.msra.mxu0 0.0
    %568 = vmatprep.subr.mxu0 0.0
    %569 = vmatpush1.msra.mxu0 0.0
    %570 = vmatprep.subr.mxu0 0.0
    %571 = vmatpush1.msra.mxu0 0.0
    %572 = vmatprep.subr.mxu0 0.0
    %573 = vmatpush1.msra.mxu0 0.0
    %574 = vmatprep.subr.mxu0 0.0
    %575 = vmatpush1.msra.mxu0 0.0
    %576 = vmatprep.mubr.f32.mxu0 0.0
    %577 = vmatmul.mubr.f32.gmra.mrb[0].mxu0 %v510
    %v578 = vpop.f32.mrb[0].mxu0
    %v579 = vadd.f32 0.0, %v578
    %v580 = vpop.f32.mrb[0].mxu0
    %v581 = vadd.f32 0.0, %v580
    %582 = vdwg.mxu0
    %v583 = vadd.f32 %v507, %v579
    %v584 = vadd.f32 %v508, %v581
    %v585 = vxor.u32 %v583, 2147483648
    %v586 = vxor.u32 %v584, 2147483648
    %v587 = vmul.f32 %v585, 1.442695
    %v588 = vpow.pop %v587
    %v589 = vmul.f32 %v586, 1.442695
    %v590 = vpow.pop %v589
    %v591 = vadd.f32 %v588, 1.0
    %v592 = vadd.f32 %v590, 1.0
    %v593 = vrcp.pop %v591
    %v594 = vmul.f32 1.0, %v593
    %v595 = vrcp.pop %v592
    %v596 = vmul.f32 1.0, %v595
    %v597 = vtanh.pop %v584
    %v598 = vmul.f32 %v594, %v492
    %600 = vrot.lane.b32.xlu0 %v597, 64
    %v601 = vpop.permute.xlu0 %600
    %v603 = vmul.f32 %v594, %v601
    %605 = vrot.lane.b32.xlu0 %v603, 64
    %v606 = vpop.permute.xlu0 %605
    %v608 = vadd.f32 %v598, %v606
    %v609 = vtanh.pop %v608
    %611 = vrot.lane.b32.xlu0 %v609, 64
    %v612 = vpop.permute.xlu0 %611
    %v614 = vmul.f32 %v596, %v612
    %s615 = scalar_lea.vmem [#allocation6], 16
    %v616 = vld [vmem:[%s615] sm:$0xff]
    %v617 = vadd.f32 %v614, %v616
    %s618 = scalar_lea.vmem [#allocation11], 16
    %619 = vst.msk [vmem:[%s618] sm:$0xff] %vm278, %v617
    %s620 = smul.u32 3, 2
    %s621 = smul.addr %s620, 8
    %s622 = scalar_lea.vmem [#allocation2], %s621
    %v623 = vld [vmem:[%s622] sm:$0xff]
    %v624 = vld [vmem:[%s622 + $0x8] sm:$0xff]
    %v626 = vsel %vm278, %v614, 0
    %628 = vmatprep.subr.mxu0 %v258
    %629 = vmatpush1.msra.mxu0 %v257
    %630 = vmatprep.subr.mxu0 %v260
    %631 = vmatpush1.msra.mxu0 %v259
    %632 = vmatprep.subr.mxu0 %v262
    %633 = vmatpush1.msra.mxu0 %v261
    %634 = vmatprep.subr.mxu0 %v264
    %635 = vmatpush1.msra.mxu0 %v263
    %636 = vmatprep.subr.mxu0 %v266
    %637 = vmatpush1.msra.mxu0 %v265
    %638 = vmatprep.subr.mxu0 %v268
    %639 = vmatpush1.msra.mxu0 %v267
    %640 = vmatprep.subr.mxu0 %v270
    %641 = vmatpush1.msra.mxu0 %v269
    %642 = vmatprep.subr.mxu0 %v272
    %643 = vmatpush1.msra.mxu0 %v271
    %644 = vmatprep.subr.mxu0 0.0
    %645 = vmatpush1.msra.mxu0 0.0
    %646 = vmatprep.subr.mxu0 0.0
    %647 = vmatpush1.msra.mxu0 0.0
    %648 = vmatprep.subr.mxu0 0.0
    %649 = vmatpush1.msra.mxu0 0.0
    %650 = vmatprep.subr.mxu0 0.0
    %651 = vmatpush1.msra.mxu0 0.0
    %652 = vmatprep.subr.mxu0 0.0
    %653 = vmatpush1.msra.mxu0 0.0
    %654 = vmatprep.subr.mxu0 0.0
    %655 = vmatpush1.msra.mxu0 0.0
    %656 = vmatprep.subr.mxu0 0.0
    %657 = vmatpush1.msra.mxu0 0.0
    %658 = vmatprep.subr.mxu0 0.0
    %659 = vmatpush1.msra.mxu0 0.0
    %660 = vmatprep.subr.mxu0 0.0
    %661 = vmatpush1.msra.mxu0 0.0
    %662 = vmatprep.subr.mxu0 0.0
    %663 = vmatpush1.msra.mxu0 0.0
    %664 = vmatprep.subr.mxu0 0.0
    %665 = vmatpush1.msra.mxu0 0.0
    %666 = vmatprep.subr.mxu0 0.0
    %667 = vmatpush1.msra.mxu0 0.0
    %668 = vmatprep.subr.mxu0 0.0
    %669 = vmatpush1.msra.mxu0 0.0
    %670 = vmatprep.subr.mxu0 0.0
    %671 = vmatpush1.msra.mxu0 0.0
    %672 = vmatprep.subr.mxu0 0.0
    %673 = vmatpush1.msra.mxu0 0.0
    %674 = vmatprep.subr.mxu0 0.0
    %675 = vmatpush1.msra.mxu0 0.0
    %676 = vmatprep.subr.mxu0 0.0
    %677 = vmatpush1.msra.mxu0 0.0
    %678 = vmatprep.subr.mxu0 0.0
    %679 = vmatpush1.msra.mxu0 0.0
    %680 = vmatprep.subr.mxu0 0.0
    %681 = vmatpush1.msra.mxu0 0.0
    %682 = vmatprep.subr.mxu0 0.0
    %683 = vmatpush1.msra.mxu0 0.0
    %684 = vmatprep.subr.mxu0 0.0
    %685 = vmatpush1.msra.mxu0 0.0
    %686 = vmatprep.subr.mxu0 0.0
    %687 = vmatpush1.msra.mxu0 0.0
    %688 = vmatprep.subr.mxu0 0.0
    %689 = vmatpush1.msra.mxu0 0.0
    %690 = vmatprep.subr.mxu0 0.0
    %691 = vmatpush1.msra.mxu0 0.0
    %692 = vmatprep.mubr.f32.mxu0 0.0
    %693 = vmatmul.mubr.f32.gmra.mrb[0].mxu0 %v626
    %v694 = vpop.f32.mrb[0].mxu0
    %v695 = vadd.f32 0.0, %v694
    %v696 = vpop.f32.mrb[0].mxu0
    %v697 = vadd.f32 0.0, %v696
    %698 = vdwg.mxu0
    %v699 = vadd.f32 %v623, %v695
    %v700 = vadd.f32 %v624, %v697
    %v701 = vxor.u32 %v699, 2147483648
    %v702 = vxor.u32 %v700, 2147483648
    %v703 = vmul.f32 %v701, 1.442695
    %v704 = vpow.pop %v703
    %v705 = vmul.f32 %v702, 1.442695
    %v706 = vpow.pop %v705
    %v707 = vadd.f32 %v704, 1.0
    %v708 = vadd.f32 %v706, 1.0
    %v709 = vrcp.pop %v707
    %v710 = vmul.f32 1.0, %v709
    %v711 = vrcp.pop %v708
    %v712 = vmul.f32 1.0, %v711
    %v713 = vtanh.pop %v700
    %v714 = vmul.f32 %v710, %v608
    %716 = vrot.lane.b32.xlu0 %v713, 64
    %v717 = vpop.permute.xlu0 %716
    %v719 = vmul.f32 %v710, %v717
    %721 = vrot.lane.b32.xlu0 %v719, 64
    %v722 = vpop.permute.xlu0 %721
    %v724 = vadd.f32 %v714, %v722
    %v725 = vtanh.pop %v724
    %727 = vrot.lane.b32.xlu0 %v725, 64
    %v728 = vpop.permute.xlu0 %727
    %v730 = vmul.f32 %v712, %v728
    %s731 = scalar_lea.vmem [#allocation6], 24
    %v732 = vld [vmem:[%s731] sm:$0xff]
    %v733 = vadd.f32 %v730, %v732
    %s734 = scalar_lea.vmem [#allocation11], 24
    %735 = vst.msk [vmem:[%s734] sm:$0xff] %vm278, %v733
    %s736 = smul.u32 4, 2
    %s737 = smul.addr %s736, 8
    %s738 = scalar_lea.vmem [#allocation2], %s737
    %v739 = vld [vmem:[%s738] sm:$0xff]
    %v740 = vld [vmem:[%s738 + $0x8] sm:$0xff]
    %v742 = vsel %vm278, %v730, 0
    %744 = vmatprep.subr.mxu0 %v258
    %745 = vmatpush1.msra.mxu0 %v257
    %746 = vmatprep.subr.mxu0 %v260
    %747 = vmatpush1.msra.mxu0 %v259
    %748 = vmatprep.subr.mxu0 %v262
    %749 = vmatpush1.msra.mxu0 %v261
    %750 = vmatprep.subr.mxu0 %v264
    %751 = vmatpush1.msra.mxu0 %v263
    %752 = vmatprep.subr.mxu0 %v266
    %753 = vmatpush1.msra.mxu0 %v265
    %754 = vmatprep.subr.mxu0 %v268
    %755 = vmatpush1.msra.mxu0 %v267
    %756 = vmatprep.subr.mxu0 %v270
    %757 = vmatpush1.msra.mxu0 %v269
    %758 = vmatprep.subr.mxu0 %v272
    %759 = vmatpush1.msra.mxu0 %v271
    %760 = vmatprep.subr.mxu0 0.0
    %761 = vmatpush1.msra.mxu0 0.0
    %762 = vmatprep.subr.mxu0 0.0
    %763 = vmatpush1.msra.mxu0 0.0
    %764 = vmatprep.subr.mxu0 0.0
    %765 = vmatpush1.msra.mxu0 0.0
    %766 = vmatprep.subr.mxu0 0.0
    %767 = vmatpush1.msra.mxu0 0.0
    %768 = vmatprep.subr.mxu0 0.0
    %769 = vmatpush1.msra.mxu0 0.0
    %770 = vmatprep.subr.mxu0 0.0
    %771 = vmatpush1.msra.mxu0 0.0
    %772 = vmatprep.subr.mxu0 0.0
    %773 = vmatpush1.msra.mxu0 0.0
    %774 = vmatprep.subr.mxu0 0.0
    %775 = vmatpush1.msra.mxu0 0.0
    %776 = vmatprep.subr.mxu0 0.0
    %777 = vmatpush1.msra.mxu0 0.0
    %778 = vmatprep.subr.mxu0 0.0
    %779 = vmatpush1.msra.mxu0 0.0
    %780 = vmatprep.subr.mxu0 0.0
    %781 = vmatpush1.msra.mxu0 0.0
    %782 = vmatprep.subr.mxu0 0.0
    %783 = vmatpush1.msra.mxu0 0.0
    %784 = vmatprep.subr.mxu0 0.0
    %785 = vmatpush1.msra.mxu0 0.0
    %786 = vmatprep.subr.mxu0 0.0
    %787 = vmatpush1.msra.mxu0 0.0
    %788 = vmatprep.subr.mxu0 0.0
    %789 = vmatpush1.msra.mxu0 0.0
    %790 = vmatprep.subr.mxu0 0.0
    %791 = vmatpush1.msra.mxu0 0.0
    %792 = vmatprep.subr.mxu0 0.0
    %793 = vmatpush1.msra.mxu0 0.0
    %794 = vmatprep.subr.mxu0 0.0
    %795 = vmatpush1.msra.mxu0 0.0
    %796 = vmatprep.subr.mxu0 0.0
    %797 = vmatpush1.msra.mxu0 0.0
    %798 = vmatprep.subr.mxu0 0.0
    %799 = vmatpush1.msra.mxu0 0.0
    %800 = vmatprep.subr.mxu0 0.0
    %801 = vmatpush1.msra.mxu0 0.0
    %802 = vmatprep.subr.mxu0 0.0
    %803 = vmatpush1.msra.mxu0 0.0
    %804 = vmatprep.subr.mxu0 0.0
    %805 = vmatpush1.msra.mxu0 0.0
    %806 = vmatprep.subr.mxu0 0.0
    %807 = vmatpush1.msra.mxu0 0.0
    %808 = vmatprep.mubr.f32.mxu0 0.0
    %809 = vmatmul.mubr.f32.gmra.mrb[0].mxu0 %v742
    %v810 = vpop.f32.mrb[0].mxu0
    %v811 = vadd.f32 0.0, %v810
    %v812 = vpop.f32.mrb[0].mxu0
    %v813 = vadd.f32 0.0, %v812
    %814 = vdwg.mxu0
    %v815 = vadd.f32 %v739, %v811
    %v816 = vadd.f32 %v740, %v813
    %v817 = vxor.u32 %v815, 2147483648
    %v818 = vxor.u32 %v816, 2147483648
    %v819 = vmul.f32 %v817, 1.442695
    %v820 = vpow.pop %v819
    %v821 = vmul.f32 %v818, 1.442695
    %v822 = vpow.pop %v821
    %v823 = vadd.f32 %v820, 1.0
    %v824 = vadd.f32 %v822, 1.0
    %v825 = vrcp.pop %v823
    %v826 = vmul.f32 1.0, %v825
    %v827 = vrcp.pop %v824
    %v828 = vmul.f32 1.0, %v827
    %v829 = vtanh.pop %v816
    %v830 = vmul.f32 %v826, %v724
    %832 = vrot.lane.b32.xlu0 %v829, 64
    %v833 = vpop.permute.xlu0 %832
    %v835 = vmul.f32 %v826, %v833
    %837 = vrot.lane.b32.xlu0 %v835, 64
    %v838 = vpop.permute.xlu0 %837
    %v840 = vadd.f32 %v830, %v838
    %v841 = vtanh.pop %v840
    %843 = vrot.lane.b32.xlu0 %v841, 64
    %v844 = vpop.permute.xlu0 %843
    %v846 = vmul.f32 %v828, %v844
    %s847 = scalar_lea.vmem [#allocation6], 32
    %v848 = vld [vmem:[%s847] sm:$0xff]
    %v849 = vadd.f32 %v846, %v848
    %s850 = scalar_lea.vmem [#allocation11], 32
    %851 = vst.msk [vmem:[%s850] sm:$0xff] %vm278, %v849
    %s852 = smul.u32 5, 2
    %s853 = smul.addr %s852, 8
    %s854 = scalar_lea.vmem [#allocation2], %s853
    %v855 = vld [vmem:[%s854] sm:$0xff]
    %v856 = vld [vmem:[%s854 + $0x8] sm:$0xff]
    %v858 = vsel %vm278, %v846, 0
    %860 = vmatprep.subr.mxu0 %v258
    %861 = vmatpush1.msra.mxu0 %v257
    %862 = vmatprep.subr.mxu0 %v260
    %863 = vmatpush1.msra.mxu0 %v259
    %864 = vmatprep.subr.mxu0 %v262
    %865 = vmatpush1.msra.mxu0 %v261
    %866 = vmatprep.subr.mxu0 %v264
    %867 = vmatpush1.msra.mxu0 %v263
    %868 = vmatprep.subr.mxu0 %v266
    %869 = vmatpush1.msra.mxu0 %v265
    %870 = vmatprep.subr.mxu0 %v268
    %871 = vmatpush1.msra.mxu0 %v267
    %872 = vmatprep.subr.mxu0 %v270
    %873 = vmatpush1.msra.mxu0 %v269
    %874 = vmatprep.subr.mxu0 %v272
    %875 = vmatpush1.msra.mxu0 %v271
    %876 = vmatprep.subr.mxu0 0.0
    %877 = vmatpush1.msra.mxu0 0.0
    %878 = vmatprep.subr.mxu0 0.0
    %879 = vmatpush1.msra.mxu0 0.0
    %880 = vmatprep.subr.mxu0 0.0
    %881 = vmatpush1.msra.mxu0 0.0
    %882 = vmatprep.subr.mxu0 0.0
    %883 = vmatpush1.msra.mxu0 0.0
    %884 = vmatprep.subr.mxu0 0.0
    %885 = vmatpush1.msra.mxu0 0.0
    %886 = vmatprep.subr.mxu0 0.0
    %887 = vmatpush1.msra.mxu0 0.0
    %888 = vmatprep.subr.mxu0 0.0
    %889 = vmatpush1.msra.mxu0 0.0
    %890 = vmatprep.subr.mxu0 0.0
    %891 = vmatpush1.msra.mxu0 0.0
    %892 = vmatprep.subr.mxu0 0.0
    %893 = vmatpush1.msra.mxu0 0.0
    %894 = vmatprep.subr.mxu0 0.0
    %895 = vmatpush1.msra.mxu0 0.0
    %896 = vmatprep.subr.mxu0 0.0
    %897 = vmatpush1.msra.mxu0 0.0
    %898 = vmatprep.subr.mxu0 0.0
    %899 = vmatpush1.msra.mxu0 0.0
    %900 = vmatprep.subr.mxu0 0.0
    %901 = vmatpush1.msra.mxu0 0.0
    %902 = vmatprep.subr.mxu0 0.0
    %903 = vmatpush1.msra.mxu0 0.0
    %904 = vmatprep.subr.mxu0 0.0
    %905 = vmatpush1.msra.mxu0 0.0
    %906 = vmatprep.subr.mxu0 0.0
    %907 = vmatpush1.msra.mxu0 0.0
    %908 = vmatprep.subr.mxu0 0.0
    %909 = vmatpush1.msra.mxu0 0.0
    %910 = vmatprep.subr.mxu0 0.0
    %911 = vmatpush1.msra.mxu0 0.0
    %912 = vmatprep.subr.mxu0 0.0
    %913 = vmatpush1.msra.mxu0 0.0
    %914 = vmatprep.subr.mxu0 0.0
    %915 = vmatpush1.msra.mxu0 0.0
    %916 = vmatprep.subr.mxu0 0.0
    %917 = vmatpush1.msra.mxu0 0.0
    %918 = vmatprep.subr.mxu0 0.0
    %919 = vmatpush1.msra.mxu0 0.0
    %920 = vmatprep.subr.mxu0 0.0
    %921 = vmatpush1.msra.mxu0 0.0
    %922 = vmatprep.subr.mxu0 0.0
    %923 = vmatpush1.msra.mxu0 0.0
    %924 = vmatprep.mubr.f32.mxu0 0.0
    %925 = vmatmul.mubr.f32.gmra.mrb[0].mxu0 %v858
    %v926 = vpop.f32.mrb[0].mxu0
    %v927 = vadd.f32 0.0, %v926
    %v928 = vpop.f32.mrb[0].mxu0
    %v929 = vadd.f32 0.0, %v928
    %930 = vdwg.mxu0
    %v931 = vadd.f32 %v855, %v927
    %v932 = vadd.f32 %v856, %v929
    %v933 = vxor.u32 %v931, 2147483648
    %v934 = vxor.u32 %v932, 2147483648
    %v935 = vmul.f32 %v933, 1.442695
    %v936 = vpow.pop %v935
    %v937 = vmul.f32 %v934, 1.442695
    %v938 = vpow.pop %v937
    %v939 = vadd.f32 %v936, 1.0
    %v940 = vadd.f32 %v938, 1.0
    %v941 = vrcp.pop %v939
    %v942 = vmul.f32 1.0, %v941
    %v943 = vrcp.pop %v940
    %v944 = vmul.f32 1.0, %v943
    %v945 = vtanh.pop %v932
    %v946 = vmul.f32 %v942, %v840
    %948 = vrot.lane.b32.xlu0 %v945, 64
    %v949 = vpop.permute.xlu0 %948
    %v951 = vmul.f32 %v942, %v949
    %953 = vrot.lane.b32.xlu0 %v951, 64
    %v954 = vpop.permute.xlu0 %953
    %v956 = vadd.f32 %v946, %v954
    %v957 = vtanh.pop %v956
    %959 = vrot.lane.b32.xlu0 %v957, 64
    %v960 = vpop.permute.xlu0 %959
    %v962 = vmul.f32 %v944, %v960
    %s963 = scalar_lea.vmem [#allocation6], 40
    %v964 = vld [vmem:[%s963] sm:$0xff]
    %v965 = vadd.f32 %v962, %v964
    %s966 = scalar_lea.vmem [#allocation11], 40
    %967 = vst.msk [vmem:[%s966] sm:$0xff] %vm278, %v965
    %s968 = smul.u32 6, 2
    %s969 = smul.addr %s968, 8
    %s970 = scalar_lea.vmem [#allocation2], %s969
    %v971 = vld [vmem:[%s970] sm:$0xff]
    %v972 = vld [vmem:[%s970 + $0x8] sm:$0xff]
    %v974 = vsel %vm278, %v962, 0
    %976 = vmatprep.subr.mxu0 %v258
    %977 = vmatpush1.msra.mxu0 %v257
    %978 = vmatprep.subr.mxu0 %v260
    %979 = vmatpush1.msra.mxu0 %v259
    %980 = vmatprep.subr.mxu0 %v262
    %981 = vmatpush1.msra.mxu0 %v261
    %982 = vmatprep.subr.mxu0 %v264
    %983 = vmatpush1.msra.mxu0 %v263
    %984 = vmatprep.subr.mxu0 %v266
    %985 = vmatpush1.msra.mxu0 %v265
    %986 = vmatprep.subr.mxu0 %v268
    %987 = vmatpush1.msra.mxu0 %v267
    %988 = vmatprep.subr.mxu0 %v270
    %989 = vmatpush1.msra.mxu0 %v269
    %990 = vmatprep.subr.mxu0 %v272
    %991 = vmatpush1.msra.mxu0 %v271
    %992 = vmatprep.subr.mxu0 0.0
    %993 = vmatpush1.msra.mxu0 0.0
    %994 = vmatprep.subr.mxu0 0.0
    %995 = vmatpush1.msra.mxu0 0.0
    %996 = vmatprep.subr.mxu0 0.0
    %997 = vmatpush1.msra.mxu0 0.0
    %998 = vmatprep.subr.mxu0 0.0
    %999 = vmatpush1.msra.mxu0 0.0
    %1000 = vmatprep.subr.mxu0 0.0
    %1001 = vmatpush1.msra.mxu0 0.0
    %1002 = vmatprep.subr.mxu0 0.0
    %1003 = vmatpush1.msra.mxu0 0.0
    %1004 = vmatprep.subr.mxu0 0.0
    %1005 = vmatpush1.msra.mxu0 0.0
    %1006 = vmatprep.subr.mxu0 0.0
    %1007 = vmatpush1.msra.mxu0 0.0
    %1008 = vmatprep.subr.mxu0 0.0
    %1009 = vmatpush1.msra.mxu0 0.0
    %1010 = vmatprep.subr.mxu0 0.0
    %1011 = vmatpush1.msra.mxu0 0.0
    %1012 = vmatprep.subr.mxu0 0.0
    %1013 = vmatpush1.msra.mxu0 0.0
    %1014 = vmatprep.subr.mxu0 0.0
    %1015 = vmatpush1.msra.mxu0 0.0
    %1016 = vmatprep.subr.mxu0 0.0
    %1017 = vmatpush1.msra.mxu0 0.0
    %1018 = vmatprep.subr.mxu0 0.0
    %1019 = vmatpush1.msra.mxu0 0.0
    %1020 = vmatprep.subr.mxu0 0.0
    %1021 = vmatpush1.msra.mxu0 0.0
    %1022 = vmatprep.subr.mxu0 0.0
    %1023 = vmatpush1.msra.mxu0 0.0
    %1024 = vmatprep.subr.mxu0 0.0
    %1025 = vmatpush1.msra.mxu0 0.0
    %1026 = vmatprep.subr.mxu0 0.0
    %1027 = vmatpush1.msra.mxu0 0.0
    %1028 = vmatprep.subr.mxu0 0.0
    %1029 = vmatpush1.msra.mxu0 0.0
    %1030 = vmatprep.subr.mxu0 0.0
    %1031 = vmatpush1.msra.mxu0 0.0
    %1032 = vmatprep.subr.mxu0 0.0
    %1033 = vmatpush1.msra.mxu0 0.0
    %1034 = vmatprep.subr.mxu0 0.0
    %1035 = vmatpush1.msra.mxu0 0.0
    %1036 = vmatprep.subr.mxu0 0.0
    %1037 = vmatpush1.msra.mxu0 0.0
    %1038 = vmatprep.subr.mxu0 0.0
    %1039 = vmatpush1.msra.mxu0 0.0
    %1040 = vmatprep.mubr.f32.mxu0 0.0
    %1041 = vmatmul.mubr.f32.gmra.mrb[0].mxu0 %v974
    %v1042 = vpop.f32.mrb[0].mxu0
    %v1043 = vadd.f32 0.0, %v1042
    %v1044 = vpop.f32.mrb[0].mxu0
    %v1045 = vadd.f32 0.0, %v1044
    %1046 = vdwg.mxu0
    %v1047 = vadd.f32 %v971, %v1043
    %v1048 = vadd.f32 %v972, %v1045
    %v1049 = vxor.u32 %v1047, 2147483648
    %v1050 = vxor.u32 %v1048, 2147483648
    %v1051 = vmul.f32 %v1049, 1.442695
    %v1052 = vpow.pop %v1051
    %v1053 = vmul.f32 %v1050, 1.442695
    %v1054 = vpow.pop %v1053
    %v1055 = vadd.f32 %v1052, 1.0
    %v1056 = vadd.f32 %v1054, 1.0
    %v1057 = vrcp.pop %v1055
    %v1058 = vmul.f32 1.0, %v1057
    %v1059 = vrcp.pop %v1056
    %v1060 = vmul.f32 1.0, %v1059
    %v1061 = vtanh.pop %v1048
    %v1062 = vmul.f32 %v1058, %v956
    %1064 = vrot.lane.b32.xlu0 %v1061, 64
    %v1065 = vpop.permute.xlu0 %1064
    %v1067 = vmul.f32 %v1058, %v1065
    %1069 = vrot.lane.b32.xlu0 %v1067, 64
    %v1070 = vpop.permute.xlu0 %1069
    %v1072 = vadd.f32 %v1062, %v1070
    %v1073 = vtanh.pop %v1072
    %1075 = vrot.lane.b32.xlu0 %v1073, 64
    %v1076 = vpop.permute.xlu0 %1075
    %v1078 = vmul.f32 %v1060, %v1076
    %s1079 = scalar_lea.vmem [#allocation6], 48
    %v1080 = vld [vmem:[%s1079] sm:$0xff]
    %v1081 = vadd.f32 %v1078, %v1080
    %s1082 = scalar_lea.vmem [#allocation11], 48
    %1083 = vst.msk [vmem:[%s1082] sm:$0xff] %vm278, %v1081
    %s1084 = smul.u32 7, 2
    %s1085 = smul.addr %s1084, 8
    %s1086 = scalar_lea.vmem [#allocation2], %s1085
    %v1087 = vld [vmem:[%s1086] sm:$0xff]
    %v1088 = vld [vmem:[%s1086 + $0x8] sm:$0xff]
    %v1090 = vsel %vm278, %v1078, 0
    %1092 = vmatprep.subr.mxu0 %v258
    %1093 = vmatpush1.msra.mxu0 %v257
    %1094 = vmatprep.subr.mxu0 %v260
    %1095 = vmatpush1.msra.mxu0 %v259
    %1096 = vmatprep.subr.mxu0 %v262
    %1097 = vmatpush1.msra.mxu0 %v261
    %1098 = vmatprep.subr.mxu0 %v264
    %1099 = vmatpush1.msra.mxu0 %v263
    %1100 = vmatprep.subr.mxu0 %v266
    %1101 = vmatpush1.msra.mxu0 %v265
    %1102 = vmatprep.subr.mxu0 %v268
    %1103 = vmatpush1.msra.mxu0 %v267
    %1104 = vmatprep.subr.mxu0 %v270
    %1105 = vmatpush1.msra.mxu0 %v269
    %1106 = vmatprep.subr.mxu0 %v272
    %1107 = vmatpush1.msra.mxu0 %v271
    %1108 = vmatprep.subr.mxu0 0.0
    %1109 = vmatpush1.msra.mxu0 0.0
    %1110 = vmatprep.subr.mxu0 0.0
    %1111 = vmatpush1.msra.mxu0 0.0
    %1112 = vmatprep.subr.mxu0 0.0
    %1113 = vmatpush1.msra.mxu0 0.0
    %1114 = vmatprep.subr.mxu0 0.0
    %1115 = vmatpush1.msra.mxu0 0.0
    %1116 = vmatprep.subr.mxu0 0.0
    %1117 = vmatpush1.msra.mxu0 0.0
    %1118 = vmatprep.subr.mxu0 0.0
    %1119 = vmatpush1.msra.mxu0 0.0
    %1120 = vmatprep.subr.mxu0 0.0
    %1121 = vmatpush1.msra.mxu0 0.0
    %1122 = vmatprep.subr.mxu0 0.0
    %1123 = vmatpush1.msra.mxu0 0.0
    %1124 = vmatprep.subr.mxu0 0.0
    %1125 = vmatpush1.msra.mxu0 0.0
    %1126 = vmatprep.subr.mxu0 0.0
    %1127 = vmatpush1.msra.mxu0 0.0
    %1128 = vmatprep.subr.mxu0 0.0
    %1129 = vmatpush1.msra.mxu0 0.0
    %1130 = vmatprep.subr.mxu0 0.0
    %1131 = vmatpush1.msra.mxu0 0.0
    %1132 = vmatprep.subr.mxu0 0.0
    %1133 = vmatpush1.msra.mxu0 0.0
    %1134 = vmatprep.subr.mxu0 0.0
    %1135 = vmatpush1.msra.mxu0 0.0
    %1136 = vmatprep.subr.mxu0 0.0
    %1137 = vmatpush1.msra.mxu0 0.0
    %1138 = vmatprep.subr.mxu0 0.0
    %1139 = vmatpush1.msra.mxu0 0.0
    %1140 = vmatprep.subr.mxu0 0.0
    %1141 = vmatpush1.msra.mxu0 0.0
    %1142 = vmatprep.subr.mxu0 0.0
    %1143 = vmatpush1.msra.mxu0 0.0
    %1144 = vmatprep.subr.mxu0 0.0
    %1145 = vmatpush1.msra.mxu0 0.0
    %1146 = vmatprep.subr.mxu0 0.0
    %1147 = vmatpush1.msra.mxu0 0.0
    %1148 = vmatprep.subr.mxu0 0.0
    %1149 = vmatpush1.msra.mxu0 0.0
    %1150 = vmatprep.subr.mxu0 0.0
    %1151 = vmatpush1.msra.mxu0 0.0
    %1152 = vmatprep.subr.mxu0 0.0
    %1153 = vmatpush1.msra.mxu0 0.0
    %1154 = vmatprep.subr.mxu0 0.0
    %1155 = vmatpush1.msra.mxu0 0.0
    %1156 = vmatprep.mubr.f32.mxu0 0.0
    %1157 = vmatmul.mubr.f32.gmra.mrb[0].mxu0 %v1090
    %v1158 = vpop.f32.mrb[0].mxu0
    %v1159 = vadd.f32 0.0, %v1158
    %v1160 = vpop.f32.mrb[0].mxu0
    %v1161 = vadd.f32 0.0, %v1160
    %1162 = vdwg.mxu0
    %v1163 = vadd.f32 %v1087, %v1159
    %v1164 = vadd.f32 %v1088, %v1161
    %v1165 = vxor.u32 %v1163, 2147483648
    %v1166 = vxor.u32 %v1164, 2147483648
    %v1167 = vmul.f32 %v1165, 1.442695
    %v1168 = vpow.pop %v1167
    %v1169 = vmul.f32 %v1166, 1.442695
    %v1170 = vpow.pop %v1169
    %v1171 = vadd.f32 %v1168, 1.0
    %v1172 = vadd.f32 %v1170, 1.0
    %v1173 = vrcp.pop %v1171
    %v1174 = vmul.f32 1.0, %v1173
    %v1175 = vrcp.pop %v1172
    %v1176 = vmul.f32 1.0, %v1175
    %v1177 = vtanh.pop %v1164
    %v1178 = vmul.f32 %v1174, %v1072
    %1180 = vrot.lane.b32.xlu0 %v1177, 64
    %v1181 = vpop.permute.xlu0 %1180
    %v1183 = vmul.f32 %v1174, %v1181
    %1185 = vrot.lane.b32.xlu0 %v1183, 64
    %v1186 = vpop.permute.xlu0 %1185
    %v1188 = vadd.f32 %v1178, %v1186
    %v1189 = vtanh.pop %v1188
    %1191 = vrot.lane.b32.xlu0 %v1189, 64
    %v1192 = vpop.permute.xlu0 %1191
    %v1194 = vmul.f32 %v1176, %v1192
    %s1195 = scalar_lea.vmem [#allocation6], 56
    %v1196 = vld [vmem:[%s1195] sm:$0xff]
    %v1197 = vadd.f32 %v1194, %v1196
    %s1198 = scalar_lea.vmem [#allocation11], 56
    %1199 = vst.msk [vmem:[%s1198] sm:$0xff] %vm278, %v1197
    // Predicated region
    $region38: #{tpu_custom_call.1} parent=1 // pred_check
      _
    $region39: #{tpu_custom_call.1} parent=1 // pred_check_branch
      %1201 = sbr.rel (0) target = $region41
    $region40: #{tpu_custom_call.1} parent=1 // pred_region
      %s1203 = ssub.s32 1024, 1024
      %1204 = vsyncadd [#allocation5], %s1203
      %s1205 = sshll.u32 [#allocation11], 4
      %s1206 = int_to_ptr.vmem [resolvable:$true] %s1205
      %1211 = dma.vmem_to_hbm [thread:$0]  %s1206, 1024, %s5, [#allocation5], 128, 128, 8
    $region41: #{tpu_custom_call.1} parent=1 // pred_fallthru
      _
    // Predicated region
    $region42: #{tpu_custom_call.1} parent=1 // pred_check
      _
    $region43: #{tpu_custom_call.1} parent=1 // pred_check_branch
      %1213 = sbr.rel (0) target = $region45
    $region44: #{tpu_custom_call.1} parent=1 // pred_region
      %1214 = dma.done [#allocation5], 1024
    $region45: #{tpu_custom_call.1} parent=1 // pred_fallthru
      _
    %1215 = vsyncpa [#allocation4], 1
    %1216 = vsyncpa [#allocation7], 1
    %1217 = vsyncpa [#allocation10], 1
    %1218 = vsyncpa [#allocation5], 1

</llo_original>
